<compile_context>
chip_gen: v5e
topology: v5e:2x2
jax: 0.10.0
libtpu: 0.0.40
codegen_flags: <defaults>
</compile_context>

<pallas_src>
import functools

import jax
import jax.numpy as jnp
from jax import lax
from jax.experimental import pallas as pl
from jax.experimental.pallas import tpu as pltpu


def gat_kernel(x_ref, w_ref, wb_ref, g_ref, b_ref, o_ref, *, n_valid):
    # x_ref:  (Bblk, Np, C)  bf16 batch block of inputs
    # w_ref:  (C, Dp)        bf16 linear weight (D padded to lane multiple)
    # wb_ref: (1, Dp)        f32 linear bias
    # g_ref:  (Np, Np)       f32 adjacency (grid-invariant, resident)
    # b_ref:  (1, Dp)        f32 layer bias (self.b)
    # o_ref:  (Bblk, Np, Dp) f32 output block (lane-dense last dim)
    bblk, np_, c = x_ref.shape
    dp = w_ref.shape[1]

    x = x_ref[...]
    w = w_ref[...]
    wb = wb_ref[...]
    g = g_ref[...]
    b = b_ref[...]

    # h = W(inputs): one flattened lane-dense (Bblk*Np, C) @ (C, Dp) MXU pass
    # (bf16 operands, f32 accumulation).  The reshapes only merge/split the
    # leading dims (Np is a multiple of 8), so they are layout-trivial.
    h = jnp.dot(x.reshape(bblk * np_, c), w,
                preferred_element_type=jnp.float32)
    h = h.reshape(bblk, np_, dp) + wb                     # (Bblk, Np, Dp) f32

    hb = h.astype(jnp.bfloat16)

    # scores = h @ h^T, contracting D directly (batched over Bblk).
    # NOTE: if a bundle dump shows an XLU vxpose feeding this dot_general and
    # the vector-extended slot saturates, materialize h^T once per batch
    # instead — cannot be verified without hardware here.
    raw = lax.dot_general(hb, hb,
                          dimension_numbers=(((2,), (2,)), ((0,), (0,))),
                          preferred_element_type=jnp.float32)  # (Bblk, Np, Np)

    # outputs = scores * graph with masked_fill(., -1e16) where there is no
    # edge (robust form of the PyTorch `outputs == 0` test).  Padded columns
    # have graph == 0 so they are masked too.
    gb = g[None, :, :]
    s = jnp.where(gb != 0.0, raw * gb, jnp.float32(-1e16))

    # softmax over the last axis; exp in f32 (portable to v5e), approx
    # reciprocal on the EUP slot.
    m = jnp.max(s, axis=-1, keepdims=True)
    e = jnp.exp(s - m)
    if n_valid != np_:
        # Zero out the padded key columns so degenerate (all-masked) rows
        # normalize over the real N keys, exactly like the unpadded math.
        col = lax.broadcasted_iota(jnp.int32, (1, 1, np_), 2)
        e = jnp.where(col < n_valid, e, 0.0)
    attn = e * pl.reciprocal(jnp.sum(e, axis=-1, keepdims=True), approx=True)

    # out = attn @ h + b (bf16 operands, f32 accumulation).
    out = lax.dot_general(attn.astype(jnp.bfloat16), hb,
                          dimension_numbers=(((2,), (1,)), ((0,), (0,))),
                          preferred_element_type=jnp.float32) + b
    o_ref[...] = out.astype(o_ref.dtype)


def gat_forward(x, W, Wb, graph, b, *, block_b=None):
    """x: [B, N, C] f32, W: [C, D], Wb: [D], graph: [N, N], b: [D] -> [B, N, D]."""
    B, N, C = x.shape
    D = W.shape[1]
    Dp = pl.cdiv(D, 128) * 128     # lane-dense output / projection width
    Np = pl.cdiv(N, 128) * 128     # lane-dense score tile / softmax reduction

    # Zero-padding keeps real rows/columns numerically exact.
    if Dp != D:
        W = jnp.pad(W, ((0, 0), (0, Dp - D)))
        Wb = jnp.pad(Wb, (0, Dp - D))
        b = jnp.pad(b, (0, Dp - D))
    if Np != N:
        x = jnp.pad(x, ((0, 0), (0, Np - N), (0, 0)))
        graph = jnp.pad(graph, ((0, Np - N), (0, Np - N)))

    # bf16 MXU operands (f32 accumulation inside the kernel); biases and the
    # (possibly weighted) adjacency stay f32.
    xb = x.astype(jnp.bfloat16)
    Wc = W.astype(jnp.bfloat16)
    graph = graph.astype(jnp.float32)
    Wb2 = Wb.astype(jnp.float32).reshape(1, Dp)
    b2 = b.astype(jnp.float32).reshape(1, Dp)

    # --- VMEM budget & batch-block sizing -----------------------------------
    try:
        vmem_cap = int(pltpu.get_tpu_info().vmem_capacity_bytes)
    except Exception:
        vmem_cap = 64 << 20                        # v7x (most restrictive)
    vmem_limit = min(vmem_cap - (16 << 20), 100 << 20)
    vmem_limit = max(vmem_limit, 32 << 20)

    per_b = (3 * Np * Np * 4          # raw scores, exp, attn (f32)
             + Np * Dp * (4 + 2)      # h (f32) + hb (bf16)
             + 2 * Np * C * 2         # x block, double buffered (bf16)
             + 2 * Np * Dp * 4)       # out block, double buffered (f32)
    resident = Np * Np * 4 + C * Dp * 2 + 2 * Dp * 4   # graph + W + biases
    budget = max(vmem_limit // 2 - resident, per_b)
    cap = max(1, budget // per_b)
    if block_b is not None:
        cap = min(cap, block_b)
    if B >= 2:
        cap = min(cap, B // 2)        # >= 2 grid steps -> both v7x TensorCores
    # Largest divisor of B within the cap: no batch padding, no wasted compute.
    bblk = max(d for d in range(1, min(cap, B) + 1) if B % d == 0)
    grid = (B // bblk,)

    kernel = functools.partial(gat_kernel, n_valid=N)

    def build(single_buffer_resident):
        res = ({"pipeline_mode": pl.Buffered(1)}
               if single_buffer_resident else {})
        in_specs = [
            pl.BlockSpec((bblk, Np, C), lambda i: (i, 0, 0)),        # x block
            pl.BlockSpec((C, Dp), lambda i: (0, 0), **res),          # W
            pl.BlockSpec((1, Dp), lambda i: (0, 0), **res),          # Wb
            pl.BlockSpec((Np, Np), lambda i: (0, 0), **res),         # graph
            pl.BlockSpec((1, Dp), lambda i: (0, 0), **res),          # b
        ]
        return pl.pallas_call(
            kernel,
            out_shape=jax.ShapeDtypeStruct((B, Np, Dp), jnp.float32),
            grid=grid,
            in_specs=in_specs,
            out_specs=pl.BlockSpec((bblk, Np, Dp), lambda i: (i, 0, 0)),
            compiler_params=pltpu.CompilerParams(
                dimension_semantics=("parallel",),
                vmem_limit_bytes=int(vmem_limit)),
        )

    args = (xb, Wc, Wb2, graph, b2)
    try:
        out = build(True)(*args)
    except Exception:
        # pipeline_mode=pl.Buffered(1) not accepted by this jax version:
        # fall back to default double-buffering of the resident operands.
        out = build(False)(*args)

    # The consumer needs the logical [B, N, D] view; the N/D pads are dropped
    # here (no batch pad was introduced, so no wasted batch compute).
    return out[:, :N, :D]


def gat_reference(x, W, Wb, graph, b):
    """Pure-JAX f32 reference mirroring the PyTorch forward."""
    h = jnp.einsum("bnc,cd->bnd", x, W) + Wb               # [B, N, D]
    s = jnp.einsum("bnd,bmd->bnm", h, h) * graph[None]     # [B, N, N]
    s = jnp.where(s == 0.0, -1e16, s)
    attn = jax.nn.softmax(s, axis=2)
    return jnp.einsum("bnm,bmd->bnd", attn, h) + b


if __name__ == "__main__":
    B, N, C, D = 2, 16, 8, 32

    key = jax.random.PRNGKey(0)
    kx, kw, kwb, kb, kg = jax.random.split(key, 5)

    x = jax.random.normal(kx, (B, N, C), dtype=jnp.float32)
    # MLP([in_channels, out_channels], act_type=None) ~ one linear layer.
    W = jax.random.normal(kw, (C, D), dtype=jnp.float32) * 0.1
    Wb = jax.random.normal(kwb, (D,), dtype=jnp.float32) * 0.1
    # self.b ~ nn.init.normal_
    b = jax.random.normal(kb, (D,), dtype=jnp.float32)
    # Binary adjacency with self-loops (has zeros so the mask path is used).
    graph = (jax.random.uniform(kg, (N, N)) > 0.5).astype(jnp.float32)
    graph = jnp.maximum(graph, jnp.eye(N, dtype=jnp.float32))

    out = jax.block_until_ready(gat_forward(x, W, Wb, graph, b))
    ref = gat_reference(x, W, Wb, graph, b)

    assert out.shape == (B, N, D)
    # bf16 MXU operands + approx reciprocal -> compare at a looser tolerance.
    assert jnp.allclose(out, ref, atol=2e-2, rtol=2e-2), \
        float(jnp.max(jnp.abs(out - ref)))

    print("KERNEL_OK")
</pallas_src>

<mosaic_0001>
module attributes {stable_mosaic.version = 11 : i64} {
  func.func @gat_kernel(%arg0: i32, %arg1: memref<1x128x8xbf16, #tpu.memory_space<vmem>>, %arg2: memref<8x128xbf16, #tpu.memory_space<vmem>>, %arg3: memref<1x128xf32, #tpu.memory_space<vmem>>, %arg4: memref<128x128xf32, #tpu.memory_space<vmem>>, %arg5: memref<1x128xf32, #tpu.memory_space<vmem>>, %arg6: memref<1x128x128xf32, #tpu.memory_space<vmem>>) attributes {dimension_semantics = [#tpu.dimension_semantics<parallel>], iteration_bounds = array<i64: 2>, scalar_prefetch = 0 : i64, scratch_operands = 0 : i64, tpu.core_type = #tpu.core_type<tc>, window_params = [{transform_indices = @transform_0, window_bounds = array<i64: 1, 128, 8>}, {pipeline_mode = #tpu.pipeline_mode<synchronous>, transform_indices = @transform_1, window_bounds = array<i64: 8, 128>}, {pipeline_mode = #tpu.pipeline_mode<synchronous>, transform_indices = @transform_2, window_bounds = array<i64: 1, 128>}, {pipeline_mode = #tpu.pipeline_mode<synchronous>, transform_indices = @transform_3, window_bounds = array<i64: 128, 128>}, {pipeline_mode = #tpu.pipeline_mode<synchronous>, transform_indices = @transform_4, window_bounds = array<i64: 1, 128>}, {transform_indices = @transform_5, window_bounds = array<i64: 1, 128, 128>}]} {
    %c0 = arith.constant 0 : index
    %c0_0 = arith.constant 0 : index
    %c0_1 = arith.constant 0 : index
    %0 = vector.load %arg1[%c0, %c0_0, %c0_1] : memref<1x128x8xbf16, #tpu.memory_space<vmem>>, vector<1x128x8xbf16>
    %c0_2 = arith.constant 0 : index
    %c0_3 = arith.constant 0 : index
    %1 = vector.load %arg2[%c0_2, %c0_3] : memref<8x128xbf16, #tpu.memory_space<vmem>>, vector<8x128xbf16>
    %c0_4 = arith.constant 0 : index
    %c0_5 = arith.constant 0 : index
    %2 = vector.load %arg3[%c0_4, %c0_5] : memref<1x128xf32, #tpu.memory_space<vmem>>, vector<1x128xf32>
    %c0_6 = arith.constant 0 : index
    %c0_7 = arith.constant 0 : index
    %3 = vector.load %arg4[%c0_6, %c0_7] : memref<128x128xf32, #tpu.memory_space<vmem>>, vector<128x128xf32>
    %c0_8 = arith.constant 0 : index
    %c0_9 = arith.constant 0 : index
    %4 = vector.load %arg5[%c0_8, %c0_9] : memref<1x128xf32, #tpu.memory_space<vmem>>, vector<1x128xf32>
    %5 = vector.shape_cast %0 : vector<1x128x8xbf16> to vector<128x8xbf16>
    %cst = arith.constant dense<0.000000e+00> : vector<128x128xf32>
    %6 = tpu.matmul %5, %1, %cst {dimension_numbers = #tpu.dot_dimension_numbers<[1], [0], [0], [1], [0, 0, 1, 1], [], []>} : vector<128x8xbf16>, vector<8x128xbf16>, vector<128x128xf32> -> vector<128x128xf32>
    %7 = vector.shape_cast %6 : vector<128x128xf32> to vector<1x128x128xf32>
    %8 = vector.shape_cast %2 : vector<1x128xf32> to vector<1x1x128xf32>
    %9 = vector.broadcast %8 : vector<1x1x128xf32> to vector<1x128x128xf32>
    %10 = arith.addf %7, %9 : vector<1x128x128xf32>
    %11 = arith.truncf %10 : vector<1x128x128xf32> to vector<1x128x128xbf16>
    %cst_10 = arith.constant dense<0.000000e+00> : vector<1x128x128xf32>
    %12 = tpu.matmul %11, %11, %cst_10 {dimension_numbers = #tpu.dot_dimension_numbers<[2], [2], [1], [1], [0, 0, 0, 1, 1, 1], [0], [0]>} : vector<1x128x128xbf16>, vector<1x128x128xbf16>, vector<1x128x128xf32> -> vector<1x128x128xf32>
    %13 = vector.shape_cast %3 : vector<128x128xf32> to vector<1x128x128xf32>
    %cst_11 = arith.constant 0.000000e+00 : f32
    %14 = vector.broadcast %cst_11 : f32 to vector<1x128x128xf32>
    %15 = arith.cmpf one, %13, %14 : vector<1x128x128xf32>
    %16 = arith.mulf %12, %13 : vector<1x128x128xf32>
    %cst_12 = arith.constant -1.000000e+16 : f32
    %17 = vector.broadcast %cst_12 : f32 to vector<1x128x128xf32>
    %18 = arith.select %15, %16, %17 : vector<1x128x128xi1>, vector<1x128x128xf32>
    %cst_13 = arith.constant dense<0xFF800000> : vector<1x128xf32>
    %19 = vector.multi_reduction <maximumf>, %18, %cst_13 [2] : vector<1x128x128xf32> to vector<1x128xf32>
    %20 = vector.shape_cast %19 : vector<1x128xf32> to vector<1x128x1xf32>
    %21 = vector.broadcast %20 : vector<1x128x1xf32> to vector<1x128x128xf32>
    %22 = arith.subf %18, %21 : vector<1x128x128xf32>
    %23 = math.exp %22 : vector<1x128x128xf32>
    %24 = tpu.iota {dimensions = array<i32: 2>} : vector<1x1x128xi32>
    %c16_i32 = arith.constant 16 : i32
    %25 = vector.broadcast %c16_i32 : i32 to vector<1x1x128xi32>
    %26 = arith.cmpi slt, %24, %25 : vector<1x1x128xi32>
    %cst_14 = arith.constant 0.000000e+00 : f32
    %27 = vector.shape_cast %26 : vector<1x1x128xi1> to vector<1x1x128xi1>
    %28 = vector.broadcast %27 : vector<1x1x128xi1> to vector<1x128x128xi1>
    %29 = vector.broadcast %cst_14 : f32 to vector<1x128x128xf32>
    %30 = arith.select %28, %23, %29 : vector<1x128x128xi1>, vector<1x128x128xf32>
    %cst_15 = arith.constant dense<0.000000e+00> : vector<1x128xf32>
    %31 = vector.multi_reduction <add>, %30, %cst_15 [2] : vector<1x128x128xf32> to vector<1x128xf32>
    %32 = vector.shape_cast %31 : vector<1x128xf32> to vector<1x128x1xf32>
    %33 = tpu.reciprocal %32 {approx = true} : vector<1x128x1xf32> -> vector<1x128x1xf32>
    %34 = vector.broadcast %33 : vector<1x128x1xf32> to vector<1x128x128xf32>
    %35 = arith.mulf %30, %34 : vector<1x128x128xf32>
    %36 = arith.truncf %35 : vector<1x128x128xf32> to vector<1x128x128xbf16>
    %cst_16 = arith.constant dense<0.000000e+00> : vector<1x128x128xf32>
    %37 = tpu.matmul %36, %11, %cst_16 {dimension_numbers = #tpu.dot_dimension_numbers<[2], [1], [1], [2], [0, 0, 0, 1, 1, 2], [0], [0]>} : vector<1x128x128xbf16>, vector<1x128x128xbf16>, vector<1x128x128xf32> -> vector<1x128x128xf32>
    %38 = vector.shape_cast %4 : vector<1x128xf32> to vector<1x1x128xf32>
    %39 = vector.broadcast %38 : vector<1x1x128xf32> to vector<1x128x128xf32>
    %40 = arith.addf %37, %39 : vector<1x128x128xf32>
    %c0_17 = arith.constant 0 : index
    %c0_18 = arith.constant 0 : index
    %c0_19 = arith.constant 0 : index
    %41 = vector.load %arg6[%c0_17, %c0_18, %c0_19] : memref<1x128x128xf32, #tpu.memory_space<vmem>>, vector<1x128x128xf32>
    tpu.vector_store %arg6[%c0_17, %c0_18, %c0_19], %40 {strides = array<i32>} : memref<1x128x128xf32, #tpu.memory_space<vmem>>, vector<1x128x128xf32>,
    return
  }
  func.func @transform_0(%arg0: i32) -> (i32, i32, i32) {
    %c0_i32 = arith.constant 0 : i32
    %c0_i32_0 = arith.constant 0 : i32
    %c0_i32_1 = arith.constant 0 : i32
    return %arg0, %c0_i32, %c0_i32_0 : i32, i32, i32
  }
  func.func @transform_1(%arg0: i32) -> (i32, i32) {
    %c0_i32 = arith.constant 0 : i32
    %c0_i32_0 = arith.constant 0 : i32
    %c0_i32_1 = arith.constant 0 : i32
    return %c0_i32, %c0_i32_0 : i32, i32
  }
  func.func @transform_2(%arg0: i32) -> (i32, i32) {
    %c0_i32 = arith.constant 0 : i32
    %c0_i32_0 = arith.constant 0 : i32
    %c0_i32_1 = arith.constant 0 : i32
    return %c0_i32, %c0_i32_0 : i32, i32
  }
  func.func @transform_3(%arg0: i32) -> (i32, i32) {
    %c0_i32 = arith.constant 0 : i32
    %c0_i32_0 = arith.constant 0 : i32
    %c0_i32_1 = arith.constant 0 : i32
    return %c0_i32, %c0_i32_0 : i32, i32
  }
  func.func @transform_4(%arg0: i32) -> (i32, i32) {
    %c0_i32 = arith.constant 0 : i32
    %c0_i32_0 = arith.constant 0 : i32
    %c0_i32_1 = arith.constant 0 : i32
    return %c0_i32, %c0_i32_0 : i32, i32
  }
  func.func @transform_5(%arg0: i32) -> (i32, i32, i32) {
    %c0_i32 = arith.constant 0 : i32
    %c0_i32_0 = arith.constant 0 : i32
    %c0_i32_1 = arith.constant 0 : i32
    return %arg0, %c0_i32, %c0_i32_0 : i32, i32, i32
  }
}

module attributes {stable_mosaic.version = 11 : i64} {
  func.func @gat_kernel(%arg0: i32, %arg1: memref<1x128x8xbf16, #tpu.memory_space<vmem>>, %arg2: memref<8x128xbf16, #tpu.memory_space<vmem>>, %arg3: memref<1x128xf32, #tpu.memory_space<vmem>>, %arg4: memref<128x128xf32, #tpu.memory_space<vmem>>, %arg5: memref<1x128xf32, #tpu.memory_space<vmem>>, %arg6: memref<1x128x128xf32, #tpu.memory_space<vmem>>) attributes {dimension_semantics = [#tpu.dimension_semantics<parallel>], iteration_bounds = array<i64: 2>, scalar_prefetch = 0 : i64, scratch_operands = 0 : i64, tpu.core_type = #tpu.core_type<tc>, window_params = [{transform_indices = @transform_0, window_bounds = array<i64: 1, 128, 8>}, {pipeline_mode = #tpu.pipeline_mode<synchronous>, transform_indices = @transform_1, window_bounds = array<i64: 8, 128>}, {pipeline_mode = #tpu.pipeline_mode<synchronous>, transform_indices = @transform_2, window_bounds = array<i64: 1, 128>}, {pipeline_mode = #tpu.pipeline_mode<synchronous>, transform_indices = @transform_3, window_bounds = array<i64: 128, 128>}, {pipeline_mode = #tpu.pipeline_mode<synchronous>, transform_indices = @transform_4, window_bounds = array<i64: 1, 128>}, {transform_indices = @transform_5, window_bounds = array<i64: 1, 128, 128>}]} {
    %c0 = arith.constant 0 : index
    %c0_0 = arith.constant 0 : index
    %c0_1 = arith.constant 0 : index
    %0 = vector.load %arg1[%c0, %c0_0, %c0_1] : memref<1x128x8xbf16, #tpu.memory_space<vmem>>, vector<1x128x8xbf16>
    %c0_2 = arith.constant 0 : index
    %c0_3 = arith.constant 0 : index
    %1 = vector.load %arg2[%c0_2, %c0_3] : memref<8x128xbf16, #tpu.memory_space<vmem>>, vector<8x128xbf16>
    %c0_4 = arith.constant 0 : index
    %c0_5 = arith.constant 0 : index
    %2 = vector.load %arg3[%c0_4, %c0_5] : memref<1x128xf32, #tpu.memory_space<vmem>>, vector<1x128xf32>
    %c0_6 = arith.constant 0 : index
    %c0_7 = arith.constant 0 : index
    %3 = vector.load %arg4[%c0_6, %c0_7] : memref<128x128xf32, #tpu.memory_space<vmem>>, vector<128x128xf32>
    %c0_8 = arith.constant 0 : index
    %c0_9 = arith.constant 0 : index
    %4 = vector.load %arg5[%c0_8, %c0_9] : memref<1x128xf32, #tpu.memory_space<vmem>>, vector<1x128xf32>
    %5 = vector.shape_cast %0 : vector<1x128x8xbf16> to vector<128x8xbf16>
    %cst = arith.constant dense<0.000000e+00> : vector<128x128xf32>
    %6 = tpu.matmul %5, %1, %cst {dimension_numbers = #tpu.dot_dimension_numbers<[1], [0], [0], [1], [0, 0, 1, 1], [], []>} : vector<128x8xbf16>, vector<8x128xbf16>, vector<128x128xf32> -> vector<128x128xf32>
    %7 = vector.shape_cast %6 : vector<128x128xf32> to vector<1x128x128xf32>
    %8 = vector.shape_cast %2 : vector<1x128xf32> to vector<1x1x128xf32>
    %9 = vector.broadcast %8 : vector<1x1x128xf32> to vector<1x128x128xf32>
    %10 = arith.addf %7, %9 : vector<1x128x128xf32>
    %11 = arith.truncf %10 : vector<1x128x128xf32> to vector<1x128x128xbf16>
    %cst_10 = arith.constant dense<0.000000e+00> : vector<1x128x128xf32>
    %12 = tpu.matmul %11, %11, %cst_10 {dimension_numbers = #tpu.dot_dimension_numbers<[2], [2], [1], [1], [0, 0, 0, 1, 1, 1], [0], [0]>} : vector<1x128x128xbf16>, vector<1x128x128xbf16>, vector<1x128x128xf32> -> vector<1x128x128xf32>
    %13 = vector.shape_cast %3 : vector<128x128xf32> to vector<1x128x128xf32>
    %cst_11 = arith.constant 0.000000e+00 : f32
    %14 = vector.broadcast %cst_11 : f32 to vector<1x128x128xf32>
    %15 = arith.cmpf one, %13, %14 : vector<1x128x128xf32>
    %16 = arith.mulf %12, %13 : vector<1x128x128xf32>
    %cst_12 = arith.constant -1.000000e+16 : f32
    %17 = vector.broadcast %cst_12 : f32 to vector<1x128x128xf32>
    %18 = arith.select %15, %16, %17 : vector<1x128x128xi1>, vector<1x128x128xf32>
    %cst_13 = arith.constant dense<0xFF800000> : vector<1x128xf32>
    %19 = vector.multi_reduction <maximumf>, %18, %cst_13 [2] : vector<1x128x128xf32> to vector<1x128xf32>
    %20 = vector.shape_cast %19 : vector<1x128xf32> to vector<1x128x1xf32>
    %21 = vector.broadcast %20 : vector<1x128x1xf32> to vector<1x128x128xf32>
    %22 = arith.subf %18, %21 : vector<1x128x128xf32>
    %23 = math.exp %22 : vector<1x128x128xf32>
    %24 = tpu.iota {dimensions = array<i32: 2>} : vector<1x1x128xi32>
    %c16_i32 = arith.constant 16 : i32
    %25 = vector.broadcast %c16_i32 : i32 to vector<1x1x128xi32>
    %26 = arith.cmpi slt, %24, %25 : vector<1x1x128xi32>
    %cst_14 = arith.constant 0.000000e+00 : f32
    %27 = vector.shape_cast %26 : vector<1x1x128xi1> to vector<1x1x128xi1>
    %28 = vector.broadcast %27 : vector<1x1x128xi1> to vector<1x128x128xi1>
    %29 = vector.broadcast %cst_14 : f32 to vector<1x128x128xf32>
    %30 = arith.select %28, %23, %29 : vector<1x128x128xi1>, vector<1x128x128xf32>
    %cst_15 = arith.constant dense<0.000000e+00> : vector<1x128xf32>
    %31 = vector.multi_reduction <add>, %30, %cst_15 [2] : vector<1x128x128xf32> to vector<1x128xf32>
    %32 = vector.shape_cast %31 : vector<1x128xf32> to vector<1x128x1xf32>
    %33 = tpu.reciprocal %32 {approx = true} : vector<1x128x1xf32> -> vector<1x128x1xf32>
    %34 = vector.broadcast %33 : vector<1x128x1xf32> to vector<1x128x128xf32>
    %35 = arith.mulf %30, %34 : vector<1x128x128xf32>
    %36 = arith.truncf %35 : vector<1x128x128xf32> to vector<1x128x128xbf16>
    %cst_16 = arith.constant dense<0.000000e+00> : vector<1x128x128xf32>
    %37 = tpu.matmul %36, %11, %cst_16 {dimension_numbers = #tpu.dot_dimension_numbers<[2], [1], [1], [2], [0, 0, 0, 1, 1, 2], [0], [0]>} : vector<1x128x128xbf16>, vector<1x128x128xbf16>, vector<1x128x128xf32> -> vector<1x128x128xf32>
    %38 = vector.shape_cast %4 : vector<1x128xf32> to vector<1x1x128xf32>
    %39 = vector.broadcast %38 : vector<1x1x128xf32> to vector<1x128x128xf32>
    %40 = arith.addf %37, %39 : vector<1x128x128xf32>
    %c0_17 = arith.constant 0 : index
    %c0_18 = arith.constant 0 : index
    %c0_19 = arith.constant 0 : index
    %41 = vector.load %arg6[%c0_17, %c0_18, %c0_19] : memref<1x128x128xf32, #tpu.memory_space<vmem>>, vector<1x128x128xf32>
    tpu.vector_store %arg6[%c0_17, %c0_18, %c0_19], %40 {strides = array<i32>} : memref<1x128x128xf32, #tpu.memory_space<vmem>>, vector<1x128x128xf32>,
    return
  }
  func.func @transform_0(%arg0: i32) -> (i32, i32, i32) {
    %c0_i32 = arith.constant 0 : i32
    %c0_i32_0 = arith.constant 0 : i32
    %c0_i32_1 = arith.constant 0 : i32
    return %arg0, %c0_i32, %c0_i32_0 : i32, i32, i32
  }
  func.func @transform_1(%arg0: i32) -> (i32, i32) {
    %c0_i32 = arith.constant 0 : i32
    %c0_i32_0 = arith.constant 0 : i32
    %c0_i32_1 = arith.constant 0 : i32
    return %c0_i32, %c0_i32_0 : i32, i32
  }
  func.func @transform_2(%arg0: i32) -> (i32, i32) {
    %c0_i32 = arith.constant 0 : i32
    %c0_i32_0 = arith.constant 0 : i32
    %c0_i32_1 = arith.constant 0 : i32
    return %c0_i32, %c0_i32_0 : i32, i32
  }
  func.func @transform_3(%arg0: i32) -> (i32, i32) {
    %c0_i32 = arith.constant 0 : i32
    %c0_i32_0 = arith.constant 0 : i32
    %c0_i32_1 = arith.constant 0 : i32
    return %c0_i32, %c0_i32_0 : i32, i32
  }
  func.func @transform_4(%arg0: i32) -> (i32, i32) {
    %c0_i32 = arith.constant 0 : i32
    %c0_i32_0 = arith.constant 0 : i32
    %c0_i32_1 = arith.constant 0 : i32
    return %c0_i32, %c0_i32_0 : i32, i32
  }
  func.func @transform_5(%arg0: i32) -> (i32, i32, i32) {
    %c0_i32 = arith.constant 0 : i32
    %c0_i32_0 = arith.constant 0 : i32
    %c0_i32_1 = arith.constant 0 : i32
    return %arg0, %c0_i32, %c0_i32_0 : i32, i32, i32
  }
}

</mosaic_0001>

<llo_original>
// kernel: tpu_custom_call.1
$region0: #{tpu_custom_call.1}
  #allocation0 [shape = 'u32[]', space=smem, size = 0x4, offset = 0x4, fixed_abs, tag = 'smem constant byte address 0x4 - core index']
  #allocation1 [shape = 'u32[72,128]{1,0:T(1,128)}', space=vmem, size = 0x9000, scoped, tag = 'internal scratch']
  %s0 = inlined_call_operand.vmem [shape: bf16[2,128,8], index: 0, kind: input, shape index: {}]
  %s1 = inlined_call_operand.vmem [shape: bf16[8,128], index: 1, kind: input, shape index: {}]
  %s2 = inlined_call_operand.vmem [shape: f32[1,128], index: 2, kind: input, shape index: {}]
  %s3 = inlined_call_operand.vmem [shape: f32[128,128], index: 3, kind: input, shape index: {}]
  %s4 = inlined_call_operand.vmem [shape: f32[1,128], index: 4, kind: input, shape index: {}]
  %s5 = inlined_call_operand.hbm [shape: f32[2,128,128], index: 5, kind: output, shape index: {}]
  %s6 = sld [smem:[#allocation0]]
  $region53: #{tpu_custom_call.1} parent=0
    _
  %s8 = ssub.s32 1, %s6
  %s9 = scalar_select 0, %s8, %s6
  $region1: #{tpu_custom_call.1} parent=0
    #allocation2 [shape = 'u8[131072]{0}', space=vmem, size = 0x20000, scoped, tag = 'output window, operand 0']
    #allocation3 [shape = 's32[2]{0}', space=sflag, size = 0x8, scoped, tag = 'scoped memory for tpu_custom_call.1']
    %10 = vsyncpa [#allocation3], 0
    %s11 = scalar_lea.sflag [#allocation3], 1
    %12 = vsyncpa %s11, 0
    loop: start=0, step=1, limit=4
    $region2: #{tpu_custom_call.1} parent=1 // loop_pre_header
      _
    $region3: #{tpu_custom_call.1} parent=1 // loop_header
      %s14 = sphi 0, %s18
      %p15 = scmp.ge.s32.totalorder %s14, 4
      %s24 = sphi 0, %s26
      %s27 = sphi 0, %s24
      %s28 = sphi 0, %s27
      %s44 = sphi 0, %s28
      %s48 = sphi 0, %s48
      %s50 = sphi 0, %s48
      %s51 = sphi 0, %s50
      %s65 = sphi 0, %s51
      %s69 = sphi 0, %s69
      %s71 = sphi 0, %s69
      %s72 = sphi 0, %s71
      %s86 = sphi 0, %s72
      %s90 = sphi 0, %s90
      %s92 = sphi 0, %s90
      %s93 = sphi 0, %s92
      %s107 = sphi 0, %s93
      %s111 = sphi 0, %s111
      %s113 = sphi 0, %s111
      %s114 = sphi 0, %s113
      %s128 = sphi 0, %s114
      %s134 = sphi 0, %s136
      %s137 = sphi 0, %s134
      %s138 = sphi 0, %s137
      %s154 = sphi 0, %s138
    $region4: #{tpu_custom_call.1} parent=1 // loop_header_branch
      %17 = sbr.rel (%p15) target = $region8
    $region5: #{tpu_custom_call.1} parent=1 // loop_body
      %s19 = ssub.s32 %s14, 1
      %s20 = ssub.s32 %s14, 2
      %s21 = sadd.s32 %s14, 1
      %s22 = ssub.s32 %s14, %s21
      %p23 = scmp.eq.s32.totalorder %s22, 0
      %s25 = sadd.s32 %s24, 1
      %s26 = scalar_select %p23, %s24, %s25
      %p29 = pneg %p23
      %p30 = scmp.eq.s32.totalorder %s14, 1
      %p31 = por %p29, %p30
      %p32 = scmp.ne.s32.totalorder %s24, %s27
      %p33 = scmp.eq.s32.totalorder %s14, 0
      %p34 = por %p32, %p33
      %p35 = scmp.ne.s32.totalorder %s24, %s27
      %p36 = scmp.eq.s32.totalorder %s19, 1
      %p37 = por %p35, %p36
      %p38 = scmp.ne.s32.totalorder %s27, %s28
      %p39 = scmp.eq.s32.totalorder %s19, 0
      %p40 = por %p38, %p39
      %p41 = scmp.ne.s32.totalorder %s27, %s28
      %p42 = scmp.eq.s32.totalorder %s20, 1
      %p43 = por %p41, %p42
      %p45 = scmp.ne.s32.totalorder %s28, %s44
      %p46 = scmp.eq.s32.totalorder %s20, 0
      %p47 = por %p45, %p46
      %s49 = sadd.s32 %s48, 1
      %p52 = scmp.eq.s32.totalorder %s14, 1
      %p53 = scmp.ne.s32.totalorder %s48, %s50
      %p54 = scmp.eq.s32.totalorder %s14, 0
      %p55 = por %p53, %p54
      %p56 = scmp.ne.s32.totalorder %s48, %s50
      %p57 = scmp.eq.s32.totalorder %s19, 1
      %p58 = por %p56, %p57
      %p59 = scmp.ne.s32.totalorder %s50, %s51
      %p60 = scmp.eq.s32.totalorder %s19, 0
      %p61 = por %p59, %p60
      %p62 = scmp.ne.s32.totalorder %s50, %s51
      %p63 = scmp.eq.s32.totalorder %s20, 1
      %p64 = por %p62, %p63
      %p66 = scmp.ne.s32.totalorder %s51, %s65
      %p67 = scmp.eq.s32.totalorder %s20, 0
      %p68 = por %p66, %p67
      %s70 = sadd.s32 %s69, 1
      %p73 = scmp.eq.s32.totalorder %s14, 1
      %p74 = scmp.ne.s32.totalorder %s69, %s71
      %p75 = scmp.eq.s32.totalorder %s14, 0
      %p76 = por %p74, %p75
      %p77 = scmp.ne.s32.totalorder %s69, %s71
      %p78 = scmp.eq.s32.totalorder %s19, 1
      %p79 = por %p77, %p78
      %p80 = scmp.ne.s32.totalorder %s71, %s72
      %p81 = scmp.eq.s32.totalorder %s19, 0
      %p82 = por %p80, %p81
      %p83 = scmp.ne.s32.totalorder %s71, %s72
      %p84 = scmp.eq.s32.totalorder %s20, 1
      %p85 = por %p83, %p84
      %p87 = scmp.ne.s32.totalorder %s72, %s86
      %p88 = scmp.eq.s32.totalorder %s20, 0
      %p89 = por %p87, %p88
      %s91 = sadd.s32 %s90, 1
      %p94 = scmp.eq.s32.totalorder %s14, 1
      %p95 = scmp.ne.s32.totalorder %s90, %s92
      %p96 = scmp.eq.s32.totalorder %s14, 0
      %p97 = por %p95, %p96
      %p98 = scmp.ne.s32.totalorder %s90, %s92
      %p99 = scmp.eq.s32.totalorder %s19, 1
      %p100 = por %p98, %p99
      %p101 = scmp.ne.s32.totalorder %s92, %s93
      %p102 = scmp.eq.s32.totalorder %s19, 0
      %p103 = por %p101, %p102
      %p104 = scmp.ne.s32.totalorder %s92, %s93
      %p105 = scmp.eq.s32.totalorder %s20, 1
      %p106 = por %p104, %p105
      %p108 = scmp.ne.s32.totalorder %s93, %s107
      %p109 = scmp.eq.s32.totalorder %s20, 0
      %p110 = por %p108, %p109
      %s112 = sadd.s32 %s111, 1
      %p115 = scmp.eq.s32.totalorder %s14, 1
      %p116 = scmp.ne.s32.totalorder %s111, %s113
      %p117 = scmp.eq.s32.totalorder %s14, 0
      %p118 = por %p116, %p117
      %p119 = scmp.ne.s32.totalorder %s111, %s113
      %p120 = scmp.eq.s32.totalorder %s19, 1
      %p121 = por %p119, %p120
      %p122 = scmp.ne.s32.totalorder %s113, %s114
      %p123 = scmp.eq.s32.totalorder %s19, 0
      %p124 = por %p122, %p123
      %p125 = scmp.ne.s32.totalorder %s113, %s114
      %p126 = scmp.eq.s32.totalorder %s20, 1
      %p127 = por %p125, %p126
      %p129 = scmp.ne.s32.totalorder %s114, %s128
      %p130 = scmp.eq.s32.totalorder %s20, 0
      %p131 = por %p129, %p130
      %s132 = ssub.s32 %s14, %s21
      %p133 = scmp.eq.s32.totalorder %s132, 0
      %s135 = sadd.s32 %s134, 1
      %s136 = scalar_select %p133, %s134, %s135
      %p139 = pneg %p133
      %p140 = scmp.eq.s32.totalorder %s14, 1
      %p141 = por %p139, %p140
      %p142 = scmp.ne.s32.totalorder %s134, %s137
      %p143 = scmp.eq.s32.totalorder %s14, 0
      %p144 = por %p142, %p143
      %p145 = scmp.ne.s32.totalorder %s134, %s137
      %p146 = scmp.eq.s32.totalorder %s19, 1
      %p147 = por %p145, %p146
      %p148 = scmp.ne.s32.totalorder %s137, %s138
      %p149 = scmp.eq.s32.totalorder %s19, 0
      %p150 = por %p148, %p149
      %p151 = scmp.ne.s32.totalorder %s137, %s138
      %p152 = scmp.eq.s32.totalorder %s20, 1
      %p153 = por %p151, %p152
      %p155 = scmp.ne.s32.totalorder %s138, %s154
      %p156 = scmp.eq.s32.totalorder %s20, 0
      %p157 = por %p155, %p156
      %p158 = scmp.le.s32.totalorder 1, %s14
      %p159 = scmp.lt.s32.totalorder %s14, 3
      %p160 = pnand %p158, %p159
      %p161 = pneg %p160
      // Predicated region
      $region9: #{tpu_custom_call.1} parent=5 // pred_check
        _
      $region10: #{tpu_custom_call.1} parent=5 // pred_check_branch
        %163 = sbr.rel (%p160) target = $region12
      $region11: #{tpu_custom_call.1} parent=5 // pred_region
        %s164 = ssub.s32 %s14, 1
        // Predicated region
        $region13: #{tpu_custom_call.1} parent=11 // pred_check
          %p165 = pneg %p61
        $region14: #{tpu_custom_call.1} parent=11 // pred_check_branch
          %167 = sbr.rel (%p165) target = $region16
        $region15: #{tpu_custom_call.1} parent=11 // pred_region
          _
        $region16: #{tpu_custom_call.1} parent=11 // pred_fallthru
          _
        // Predicated region
        $region17: #{tpu_custom_call.1} parent=11 // pred_check
          %p168 = pneg %p82
        $region18: #{tpu_custom_call.1} parent=11 // pred_check_branch
          %170 = sbr.rel (%p168) target = $region20
        $region19: #{tpu_custom_call.1} parent=11 // pred_region
          _
        $region20: #{tpu_custom_call.1} parent=11 // pred_fallthru
          _
        // Predicated region
        $region21: #{tpu_custom_call.1} parent=11 // pred_check
          %p171 = pneg %p103
        $region22: #{tpu_custom_call.1} parent=11 // pred_check_branch
          %173 = sbr.rel (%p171) target = $region24
        $region23: #{tpu_custom_call.1} parent=11 // pred_region
          _
        $region24: #{tpu_custom_call.1} parent=11 // pred_fallthru
          _
        // Predicated region
        $region25: #{tpu_custom_call.1} parent=11 // pred_check
          %p174 = pneg %p124
        $region26: #{tpu_custom_call.1} parent=11 // pred_check_branch
          %176 = sbr.rel (%p174) target = $region28
        $region27: #{tpu_custom_call.1} parent=11 // pred_region
          _
        $region28: #{tpu_custom_call.1} parent=11 // pred_fallthru
          _
      $region12: #{tpu_custom_call.1} parent=5 // pred_fallthru
        _
      %p177 = scmp.lt.s32.totalorder %s14, 2
      // Predicated region
      $region29: #{tpu_custom_call.1} parent=5 // pred_check
        %p178 = pneg %p177
      $region30: #{tpu_custom_call.1} parent=5 // pred_check_branch
        %180 = sbr.rel (%p178) target = $region32
      $region31: #{tpu_custom_call.1} parent=5 // pred_region
        // Predicated region
        $region33: #{tpu_custom_call.1} parent=31 // pred_check
          %p181 = pneg %p34
        $region34: #{tpu_custom_call.1} parent=31 // pred_check_branch
          %183 = sbr.rel (%p181) target = $region36
        $region35: #{tpu_custom_call.1} parent=31 // pred_region
          %p184 = scmp.lt.s32.totalorder %s14, 1
          %s185 = scalar_select %p184, %s14, 1
          %s186 = smul.addr %s185, 16
          %s187 = smul.addr %s186, 4
          %s188 = scalar_lea.vmem %s0, %s187
        $region36: #{tpu_custom_call.1} parent=31 // pred_fallthru
          _
      $region32: #{tpu_custom_call.1} parent=5 // pred_fallthru
        _
      %p189 = scmp.le.s32.totalorder 1, %s14
      %p190 = scmp.lt.s32.totalorder %s14, 3
      %p191 = pnand %p189, %p190
      %p192 = pneg %p191
      // Predicated region
      $region37: #{tpu_custom_call.1} parent=5 // pred_check
        _
      $region38: #{tpu_custom_call.1} parent=5 // pred_check_branch
        %194 = sbr.rel (%p191) target = $region40
      $region39: #{tpu_custom_call.1} parent=5 // pred_region
        %s195 = ssub.s32 %s14, 1
        %p196 = scmp.lt.s32.totalorder %s19, 1
        %s197 = scalar_select %p196, %s19, 1
        %s198 = smul.addr %s197, 16
        %s199 = smul.addr %s198, 4
        %s200 = scalar_lea.vmem %s0, %s199
        %p201 = pneg %p40
        %p202 = pneg %p37
        %p203 = pneg %p61
        %p204 = pneg %p58
        %p205 = pneg %p82
        %p206 = pneg %p79
        %p207 = pneg %p103
        %p208 = pneg %p100
        %p209 = pneg %p124
        %p210 = pneg %p121
        %p211 = pneg %p150
        %p212 = pneg %p147
        %s213 = sand.u32 %s137, 1
        %s214 = scalar_lea.sflag [#allocation3], %s213
        %s215 = sand.u32 %s137, 1
        %s216 = smul.addr %s215, 128
        %s217 = scalar_lea.vmem [#allocation2], %s216
        %p218 = scmp.lt.s32.totalorder %s19, 1
        %s219 = scalar_select %p218, %s19, 1
        %s220 = smul.addr %s219, 16
        %s221 = smul.addr %s220, 4
        %s222 = scalar_lea.vmem %s0, %s221
        %v224 = vld [vmem:[%s222] sm:$0xf]
        %v225 = vld [vmem:[%s222 + $0x4] sm:$0xf]
        %v226 = vld [vmem:[%s222 + $0x8] sm:$0xf]
        %v227 = vld [vmem:[%s222 + $0xc] sm:$0xf]
        %v228 = vld [vmem:[%s222 + $0x10] sm:$0xf]
        %v229 = vld [vmem:[%s222 + $0x14] sm:$0xf]
        %v230 = vld [vmem:[%s222 + $0x18] sm:$0xf]
        %v231 = vld [vmem:[%s222 + $0x1c] sm:$0xf]
        %v232 = vld [vmem:[%s222 + $0x20] sm:$0xf]
        %v233 = vld [vmem:[%s222 + $0x24] sm:$0xf]
        %v234 = vld [vmem:[%s222 + $0x28] sm:$0xf]
        %v235 = vld [vmem:[%s222 + $0x2c] sm:$0xf]
        %v236 = vld [vmem:[%s222 + $0x30] sm:$0xf]
        %v237 = vld [vmem:[%s222 + $0x34] sm:$0xf]
        %v238 = vld [vmem:[%s222 + $0x38] sm:$0xf]
        %v239 = vld [vmem:[%s222 + $0x3c] sm:$0xf]
        %v240 = vld [vmem:[%s1] sm:$0xf]
        %v241 = vld [vmem:[%s2] sm:$0x1]
        %v242 = vld [vmem:[%s3] sm:$0xff]
        %v243 = vld [vmem:[%s3 + $0x8] sm:$0xff]
        %v244 = vld [vmem:[%s3 + $0x10] sm:$0xff]
        %v245 = vld [vmem:[%s3 + $0x18] sm:$0xff]
        %v246 = vld [vmem:[%s3 + $0x20] sm:$0xff]
        %v247 = vld [vmem:[%s3 + $0x28] sm:$0xff]
        %v248 = vld [vmem:[%s3 + $0x30] sm:$0xff]
        %v249 = vld [vmem:[%s3 + $0x38] sm:$0xff]
        %v250 = vld [vmem:[%s3 + $0x40] sm:$0xff]
        %v251 = vld [vmem:[%s3 + $0x48] sm:$0xff]
        %v252 = vld [vmem:[%s3 + $0x50] sm:$0xff]
        %v253 = vld [vmem:[%s3 + $0x58] sm:$0xff]
        %v254 = vld [vmem:[%s3 + $0x60] sm:$0xff]
        %v255 = vld [vmem:[%s3 + $0x68] sm:$0xff]
        %v256 = vld [vmem:[%s3 + $0x70] sm:$0xff]
        %v257 = vld [vmem:[%s3 + $0x78] sm:$0xff]
        %v258 = vld [vmem:[%s4] sm:$0x1]
        %v275 = vunpack.c.l.b16 %v224
        %v276 = vunpack.c.l.b16 %v225
        %v277 = vunpack.c.l.b16 %v226
        %v278 = vunpack.c.l.b16 %v227
        %v279 = vunpack.c.l.b16 %v228
        %v280 = vunpack.c.l.b16 %v229
        %v281 = vunpack.c.l.b16 %v230
        %v282 = vunpack.c.l.b16 %v231
        %v283 = vunpack.c.l.b16 %v232
        %v284 = vunpack.c.l.b16 %v233
        %v285 = vunpack.c.l.b16 %v234
        %v286 = vunpack.c.l.b16 %v235
        %v287 = vunpack.c.l.b16 %v236
        %v288 = vunpack.c.l.b16 %v237
        %v289 = vunpack.c.l.b16 %v238
        %v290 = vunpack.c.l.b16 %v239
        %v291 = vpack.c.b16 %v276, %v275
        %v292 = vpack.c.b16 %v278, %v277
        %v293 = vpack.c.b16 %v280, %v279
        %v294 = vpack.c.b16 %v282, %v281
        %v295 = vpack.c.b16 %v284, %v283
        %v296 = vpack.c.b16 %v286, %v285
        %v297 = vpack.c.b16 %v288, %v287
        %v298 = vpack.c.b16 %v290, %v289
        %vm299 = vcmask 64512
        %v301 = vsel %vm299, %v291, 0
        %v304 = vsel %vm299, %v292, 0
        %v307 = vsel %vm299, %v293, 0
        %v310 = vsel %vm299, %v294, 0
        %v313 = vsel %vm299, %v295, 0
        %v316 = vsel %vm299, %v296, 0
        %v319 = vsel %vm299, %v297, 0
        %v322 = vsel %vm299, %v298, 0
        %vm324 = vcmask 1043456
        %v326 = vsel %vm324, %v240, 0
        %328 = vmatpush.bf16.msra.mxu0 0
        %329 = vmatpush.bf16.msra.mxu0 0
        %330 = vmatpush.bf16.msra.mxu0 0
        %331 = vmatpush.bf16.msra.mxu0 0
        %332 = vmatpush.bf16.msra.mxu0 0
        %333 = vmatpush.bf16.msra.mxu0 0
        %334 = vmatpush.bf16.msra.mxu0 0
        %335 = vmatpush.bf16.msra.mxu0 %v326
        %336 = vmatmul.bf16.gmra.mxu0 %v301
        %v337 = vpop.f32.mrf.mxu0
        %v338 = vadd.f32 0.0, %v337
        %v339 = vpop.f32.mrf.mxu0
        %v340 = vadd.f32 0.0, %v339
        %341 = vmatmul.bf16.gmra.mxu0 %v304
        %v342 = vpop.f32.mrf.mxu0
        %v343 = vadd.f32 0.0, %v342
        %v344 = vpop.f32.mrf.mxu0
        %v345 = vadd.f32 0.0, %v344
        %346 = vmatmul.bf16.gmra.mxu0 %v307
        %v347 = vpop.f32.mrf.mxu0
        %v348 = vadd.f32 0.0, %v347
        %v349 = vpop.f32.mrf.mxu0
        %v350 = vadd.f32 0.0, %v349
        %351 = vmatmul.bf16.gmra.mxu0 %v310
        %v352 = vpop.f32.mrf.mxu0
        %v353 = vadd.f32 0.0, %v352
        %v354 = vpop.f32.mrf.mxu0
        %v355 = vadd.f32 0.0, %v354
        %356 = vmatmul.bf16.gmra.mxu0 %v313
        %v357 = vpop.f32.mrf.mxu0
        %v358 = vadd.f32 0.0, %v357
        %v359 = vpop.f32.mrf.mxu0
        %v360 = vadd.f32 0.0, %v359
        %361 = vmatmul.bf16.gmra.mxu0 %v316
        %v362 = vpop.f32.mrf.mxu0
        %v363 = vadd.f32 0.0, %v362
        %v364 = vpop.f32.mrf.mxu0
        %v365 = vadd.f32 0.0, %v364
        %366 = vmatmul.bf16.gmra.mxu0 %v319
        %v367 = vpop.f32.mrf.mxu0
        %v368 = vadd.f32 0.0, %v367
        %v369 = vpop.f32.mrf.mxu0
        %v370 = vadd.f32 0.0, %v369
        %371 = vmatmul.bf16.gmra.mxu0 %v322
        %v372 = vpop.f32.mrf.mxu0
        %v373 = vadd.f32 0.0, %v372
        %v374 = vpop.f32.mrf.mxu0
        %v375 = vadd.f32 0.0, %v374
        %376 = vdwg.mxu0
        %v378 = vperm.slane %v241, 0
        %v380 = vadd.f32 %v338, %v378
        %v381 = vadd.f32 %v340, %v378
        %v382 = vadd.f32 %v343, %v378
        %v383 = vadd.f32 %v345, %v378
        %v384 = vadd.f32 %v348, %v378
        %v385 = vadd.f32 %v350, %v378
        %v386 = vadd.f32 %v353, %v378
        %v387 = vadd.f32 %v355, %v378
        %v388 = vadd.f32 %v358, %v378
        %v389 = vadd.f32 %v360, %v378
        %v390 = vadd.f32 %v363, %v378
        %v391 = vadd.f32 %v365, %v378
        %v392 = vadd.f32 %v368, %v378
        %v393 = vadd.f32 %v370, %v378
        %v394 = vadd.f32 %v373, %v378
        %v395 = vadd.f32 %v375, %v378
        %v396 = vpack.c.bf16 %v380, %v380
        %v397 = vpack.c.bf16 %v381, %v381
        %v398 = vpack.c.bf16 %v382, %v382
        %v399 = vpack.c.bf16 %v383, %v383
        %v400 = vpack.c.bf16 %v384, %v384
        %v401 = vpack.c.bf16 %v385, %v385
        %v402 = vpack.c.bf16 %v386, %v386
        %v403 = vpack.c.bf16 %v387, %v387
        %v404 = vpack.c.bf16 %v388, %v388
        %v405 = vpack.c.bf16 %v389, %v389
        %v406 = vpack.c.bf16 %v390, %v390
        %v407 = vpack.c.bf16 %v391, %v391
        %v408 = vpack.c.bf16 %v392, %v392
        %v409 = vpack.c.bf16 %v393, %v393
        %v410 = vpack.c.bf16 %v394, %v394
        %v411 = vpack.c.bf16 %v395, %v395
        %v428 = vunpack.c.l.b16 %v396
        %v429 = vunpack.c.l.b16 %v397
        %v430 = vunpack.c.l.b16 %v398
        %v431 = vunpack.c.l.b16 %v399
        %v432 = vunpack.c.l.b16 %v400
        %v433 = vunpack.c.l.b16 %v401
        %v434 = vunpack.c.l.b16 %v402
        %v435 = vunpack.c.l.b16 %v403
        %v436 = vunpack.c.l.b16 %v404
        %v437 = vunpack.c.l.b16 %v405
        %v438 = vunpack.c.l.b16 %v406
        %v439 = vunpack.c.l.b16 %v407
        %v440 = vunpack.c.l.b16 %v408
        %v441 = vunpack.c.l.b16 %v409
        %v442 = vunpack.c.l.b16 %v410
        %v443 = vunpack.c.l.b16 %v411
        %v444 = vpack.c.b16 %v429, %v428
        %v445 = vpack.c.b16 %v431, %v430
        %v446 = vpack.c.b16 %v433, %v432
        %v447 = vpack.c.b16 %v435, %v434
        %v448 = vpack.c.b16 %v437, %v436
        %v449 = vpack.c.b16 %v439, %v438
        %v450 = vpack.c.b16 %v441, %v440
        %v451 = vpack.c.b16 %v443, %v442
        %460 = vmatpush.bf16.xpose.msra.mxu0 %v451
        %461 = vmatpush.bf16.xpose.msra.mxu0 %v450
        %462 = vmatpush.bf16.xpose.msra.mxu0 %v449
        %463 = vmatpush.bf16.xpose.msra.mxu0 %v448
        %464 = vmatpush.bf16.xpose.msra.mxu0 %v447
        %465 = vmatpush.bf16.xpose.msra.mxu0 %v446
        %466 = vmatpush.bf16.xpose.msra.mxu0 %v445
        %467 = vmatpush.bf16.xpose.msra.mxu0 %v444
        %468 = vmatmul.bf16.gmra.mxu0 %v444
        %v469 = vpop.f32.mrf.mxu0
        %v470 = vadd.f32 0.0, %v469
        %v471 = vpop.f32.mrf.mxu0
        %v472 = vadd.f32 0.0, %v471
        %473 = vmatmul.bf16.gmra.mxu0 %v445
        %v474 = vpop.f32.mrf.mxu0
        %v475 = vadd.f32 0.0, %v474
        %v476 = vpop.f32.mrf.mxu0
        %v477 = vadd.f32 0.0, %v476
        %478 = vmatmul.bf16.gmra.mxu0 %v446
        %v479 = vpop.f32.mrf.mxu0
        %v480 = vadd.f32 0.0, %v479
        %v481 = vpop.f32.mrf.mxu0
        %v482 = vadd.f32 0.0, %v481
        %483 = vmatmul.bf16.gmra.mxu0 %v447
        %v484 = vpop.f32.mrf.mxu0
        %v485 = vadd.f32 0.0, %v484
        %v486 = vpop.f32.mrf.mxu0
        %v487 = vadd.f32 0.0, %v486
        %488 = vmatmul.bf16.gmra.mxu0 %v448
        %v489 = vpop.f32.mrf.mxu0
        %v490 = vadd.f32 0.0, %v489
        %v491 = vpop.f32.mrf.mxu0
        %v492 = vadd.f32 0.0, %v491
        %493 = vmatmul.bf16.gmra.mxu0 %v449
        %v494 = vpop.f32.mrf.mxu0
        %v495 = vadd.f32 0.0, %v494
        %v496 = vpop.f32.mrf.mxu0
        %v497 = vadd.f32 0.0, %v496
        %498 = vmatmul.bf16.gmra.mxu0 %v450
        %v499 = vpop.f32.mrf.mxu0
        %v500 = vadd.f32 0.0, %v499
        %v501 = vpop.f32.mrf.mxu0
        %v502 = vadd.f32 0.0, %v501
        %503 = vmatmul.bf16.gmra.mxu0 %v451
        %v504 = vpop.f32.mrf.mxu0
        %v505 = vadd.f32 0.0, %v504
        %v506 = vpop.f32.mrf.mxu0
        %v507 = vadd.f32 0.0, %v506
        %508 = vdwg.mxu0
        %vm509 = vcmp.ne.f32.partialorder %v242, 0.0
        %vm510 = vcmp.ne.f32.partialorder %v243, 0.0
        %vm511 = vcmp.ne.f32.partialorder %v244, 0.0
        %vm512 = vcmp.ne.f32.partialorder %v245, 0.0
        %vm513 = vcmp.ne.f32.partialorder %v246, 0.0
        %vm514 = vcmp.ne.f32.partialorder %v247, 0.0
        %vm515 = vcmp.ne.f32.partialorder %v248, 0.0
        %vm516 = vcmp.ne.f32.partialorder %v249, 0.0
        %vm517 = vcmp.ne.f32.partialorder %v250, 0.0
        %vm518 = vcmp.ne.f32.partialorder %v251, 0.0
        %vm519 = vcmp.ne.f32.partialorder %v252, 0.0
        %vm520 = vcmp.ne.f32.partialorder %v253, 0.0
        %vm521 = vcmp.ne.f32.partialorder %v254, 0.0
        %vm522 = vcmp.ne.f32.partialorder %v255, 0.0
        %vm523 = vcmp.ne.f32.partialorder %v256, 0.0
        %vm524 = vcmp.ne.f32.partialorder %v257, 0.0
        %v525 = vmul.f32 %v470, %v242
        %v526 = vmul.f32 %v472, %v243
        %v527 = vmul.f32 %v475, %v244
        %v528 = vmul.f32 %v477, %v245
        %v529 = vmul.f32 %v480, %v246
        %v530 = vmul.f32 %v482, %v247
        %v531 = vmul.f32 %v485, %v248
        %v532 = vmul.f32 %v487, %v249
        %v533 = vmul.f32 %v490, %v250
        %v534 = vmul.f32 %v492, %v251
        %v535 = vmul.f32 %v495, %v252
        %v536 = vmul.f32 %v497, %v253
        %v537 = vmul.f32 %v500, %v254
        %v538 = vmul.f32 %v502, %v255
        %v539 = vmul.f32 %v505, %v256
        %v540 = vmul.f32 %v507, %v257
        %v541 = vsel %vm509, %v525, -1e+16
        %v542 = vsel %vm510, %v526, -1e+16
        %v543 = vsel %vm511, %v527, -1e+16
        %v544 = vsel %vm512, %v528, -1e+16
        %v545 = vsel %vm513, %v529, -1e+16
        %v546 = vsel %vm514, %v530, -1e+16
        %v547 = vsel %vm515, %v531, -1e+16
        %v548 = vsel %vm516, %v532, -1e+16
        %v549 = vsel %vm517, %v533, -1e+16
        %v550 = vsel %vm518, %v534, -1e+16
        %v551 = vsel %vm519, %v535, -1e+16
        %v552 = vsel %vm520, %v536, -1e+16
        %v553 = vsel %vm521, %v537, -1e+16
        %v554 = vsel %vm522, %v538, -1e+16
        %v555 = vsel %vm523, %v539, -1e+16
        %v556 = vsel %vm524, %v540, -1e+16
        %557 = vmax.xlane.f32.xlu0 %v541
        %v558 = vpop.xlane.xlu0 %557
        %559 = vmax.xlane.f32.xlu0 %v542
        %v560 = vpop.xlane.xlu0 %559
        %561 = vmax.xlane.f32.xlu0 %v543
        %v562 = vpop.xlane.xlu0 %561
        %563 = vmax.xlane.f32.xlu0 %v544
        %v564 = vpop.xlane.xlu0 %563
        %565 = vmax.xlane.f32.xlu0 %v545
        %v566 = vpop.xlane.xlu0 %565
        %567 = vmax.xlane.f32.xlu0 %v546
        %v568 = vpop.xlane.xlu0 %567
        %569 = vmax.xlane.f32.xlu0 %v547
        %v570 = vpop.xlane.xlu0 %569
        %571 = vmax.xlane.f32.xlu0 %v548
        %v572 = vpop.xlane.xlu0 %571
        %573 = vmax.xlane.f32.xlu0 %v549
        %v574 = vpop.xlane.xlu0 %573
        %575 = vmax.xlane.f32.xlu0 %v550
        %v576 = vpop.xlane.xlu0 %575
        %577 = vmax.xlane.f32.xlu0 %v551
        %v578 = vpop.xlane.xlu0 %577
        %579 = vmax.xlane.f32.xlu0 %v552
        %v580 = vpop.xlane.xlu0 %579
        %581 = vmax.xlane.f32.xlu0 %v553
        %v582 = vpop.xlane.xlu0 %581
        %583 = vmax.xlane.f32.xlu0 %v554
        %v584 = vpop.xlane.xlu0 %583
        %585 = vmax.xlane.f32.xlu0 %v555
        %v586 = vpop.xlane.xlu0 %585
        %587 = vmax.xlane.f32.xlu0 %v556
        %v588 = vpop.xlane.xlu0 %587
        %v589 = vsub.f32 %v541, %v558
        %v590 = vsub.f32 %v542, %v560
        %v591 = vsub.f32 %v543, %v562
        %v592 = vsub.f32 %v544, %v564
        %v593 = vsub.f32 %v545, %v566
        %v594 = vsub.f32 %v546, %v568
        %v595 = vsub.f32 %v547, %v570
        %v596 = vsub.f32 %v548, %v572
        %v597 = vsub.f32 %v549, %v574
        %v598 = vsub.f32 %v550, %v576
        %v599 = vsub.f32 %v551, %v578
        %v600 = vsub.f32 %v552, %v580
        %v601 = vsub.f32 %v553, %v582
        %v602 = vsub.f32 %v554, %v584
        %v603 = vsub.f32 %v555, %v586
        %v604 = vsub.f32 %v556, %v588
        %v605 = vmul.f32 %v589, 1.442695
        %v606 = vpow.pop %v605
        %v607 = vmul.f32 %v590, 1.442695
        %v608 = vpow.pop %v607
        %v609 = vmul.f32 %v591, 1.442695
        %v610 = vpow.pop %v609
        %v611 = vmul.f32 %v592, 1.442695
        %v612 = vpow.pop %v611
        %v613 = vmul.f32 %v593, 1.442695
        %v614 = vpow.pop %v613
        %v615 = vmul.f32 %v594, 1.442695
        %v616 = vpow.pop %v615
        %v617 = vmul.f32 %v595, 1.442695
        %v618 = vpow.pop %v617
        %v619 = vmul.f32 %v596, 1.442695
        %v620 = vpow.pop %v619
        %v621 = vmul.f32 %v597, 1.442695
        %v622 = vpow.pop %v621
        %v623 = vmul.f32 %v598, 1.442695
        %v624 = vpow.pop %v623
        %v625 = vmul.f32 %v599, 1.442695
        %v626 = vpow.pop %v625
        %v627 = vmul.f32 %v600, 1.442695
        %v628 = vpow.pop %v627
        %v629 = vmul.f32 %v601, 1.442695
        %v630 = vpow.pop %v629
        %v631 = vmul.f32 %v602, 1.442695
        %v632 = vpow.pop %v631
        %v633 = vmul.f32 %v603, 1.442695
        %v634 = vpow.pop %v633
        %v635 = vmul.f32 %v604, 1.442695
        %v636 = vpow.pop %v635
        %v637 = vlaneseq
        %v638 = vand.u32 %v637, 127
        %vm639 = vcmp.lt.s32.totalorder %v638, 16
        %v640 = vsel %vm639, 1, 0
        %vm641 = vcmp.eq.s32.totalorder %v640, 1
        %v642 = vsel %vm641, %v606, 0.0
        %v643 = vsel %vm641, %v608, 0.0
        %v644 = vsel %vm641, %v610, 0.0
        %v645 = vsel %vm641, %v612, 0.0
        %v646 = vsel %vm641, %v614, 0.0
        %v647 = vsel %vm641, %v616, 0.0
        %v648 = vsel %vm641, %v618, 0.0
        %v649 = vsel %vm641, %v620, 0.0
        %v650 = vsel %vm641, %v622, 0.0
        %v651 = vsel %vm641, %v624, 0.0
        %v652 = vsel %vm641, %v626, 0.0
        %v653 = vsel %vm641, %v628, 0.0
        %v654 = vsel %vm641, %v630, 0.0
        %v655 = vsel %vm641, %v632, 0.0
        %v656 = vsel %vm641, %v634, 0.0
        %v657 = vsel %vm641, %v636, 0.0
        %658 = vadd.xlane.f32.xlu0 %v642
        %v659 = vpop.xlane.xlu0 %658
        %660 = vadd.xlane.f32.xlu0 %v643
        %v661 = vpop.xlane.xlu0 %660
        %662 = vadd.xlane.f32.xlu0 %v644
        %v663 = vpop.xlane.xlu0 %662
        %664 = vadd.xlane.f32.xlu0 %v645
        %v665 = vpop.xlane.xlu0 %664
        %666 = vadd.xlane.f32.xlu0 %v646
        %v667 = vpop.xlane.xlu0 %666
        %668 = vadd.xlane.f32.xlu0 %v647
        %v669 = vpop.xlane.xlu0 %668
        %670 = vadd.xlane.f32.xlu0 %v648
        %v671 = vpop.xlane.xlu0 %670
        %672 = vadd.xlane.f32.xlu0 %v649
        %v673 = vpop.xlane.xlu0 %672
        %674 = vadd.xlane.f32.xlu0 %v650
        %v675 = vpop.xlane.xlu0 %674
        %676 = vadd.xlane.f32.xlu0 %v651
        %v677 = vpop.xlane.xlu0 %676
        %678 = vadd.xlane.f32.xlu0 %v652
        %v679 = vpop.xlane.xlu0 %678
        %680 = vadd.xlane.f32.xlu0 %v653
        %v681 = vpop.xlane.xlu0 %680
        %682 = vadd.xlane.f32.xlu0 %v654
        %v683 = vpop.xlane.xlu0 %682
        %684 = vadd.xlane.f32.xlu0 %v655
        %v685 = vpop.xlane.xlu0 %684
        %686 = vadd.xlane.f32.xlu0 %v656
        %v687 = vpop.xlane.xlu0 %686
        %688 = vadd.xlane.f32.xlu0 %v657
        %v689 = vpop.xlane.xlu0 %688
        %v690 = vrcp.pop %v659
        %v691 = vrcp.pop %v661
        %v692 = vrcp.pop %v663
        %v693 = vrcp.pop %v665
        %v694 = vrcp.pop %v667
        %v695 = vrcp.pop %v669
        %v696 = vrcp.pop %v671
        %v697 = vrcp.pop %v673
        %v698 = vrcp.pop %v675
        %v699 = vrcp.pop %v677
        %v700 = vrcp.pop %v679
        %v701 = vrcp.pop %v681
        %v702 = vrcp.pop %v683
        %v703 = vrcp.pop %v685
        %v704 = vrcp.pop %v687
        %v705 = vrcp.pop %v689
        %v706 = vmul.f32 %v642, %v690
        %v707 = vmul.f32 %v643, %v691
        %v708 = vmul.f32 %v644, %v692
        %v709 = vmul.f32 %v645, %v693
        %v710 = vmul.f32 %v646, %v694
        %v711 = vmul.f32 %v647, %v695
        %v712 = vmul.f32 %v648, %v696
        %v713 = vmul.f32 %v649, %v697
        %v714 = vmul.f32 %v650, %v698
        %v715 = vmul.f32 %v651, %v699
        %v716 = vmul.f32 %v652, %v700
        %v717 = vmul.f32 %v653, %v701
        %v718 = vmul.f32 %v654, %v702
        %v719 = vmul.f32 %v655, %v703
        %v720 = vmul.f32 %v656, %v704
        %v721 = vmul.f32 %v657, %v705
        %v722 = vpack.c.bf16 %v706, %v706
        %v723 = vpack.c.bf16 %v707, %v707
        %v724 = vpack.c.bf16 %v708, %v708
        %v725 = vpack.c.bf16 %v709, %v709
        %v726 = vpack.c.bf16 %v710, %v710
        %v727 = vpack.c.bf16 %v711, %v711
        %v728 = vpack.c.bf16 %v712, %v712
        %v729 = vpack.c.bf16 %v713, %v713
        %v730 = vpack.c.bf16 %v714, %v714
        %v731 = vpack.c.bf16 %v715, %v715
        %v732 = vpack.c.bf16 %v716, %v716
        %v733 = vpack.c.bf16 %v717, %v717
        %v734 = vpack.c.bf16 %v718, %v718
        %v735 = vpack.c.bf16 %v719, %v719
        %v736 = vpack.c.bf16 %v720, %v720
        %v737 = vpack.c.bf16 %v721, %v721
        %v739 = vperm.slane %v258, 0
        %v757 = vunpack.c.l.b16 %v722
        %v758 = vunpack.c.l.b16 %v723
        %v759 = vunpack.c.l.b16 %v724
        %v760 = vunpack.c.l.b16 %v725
        %v761 = vunpack.c.l.b16 %v726
        %v762 = vunpack.c.l.b16 %v727
        %v763 = vunpack.c.l.b16 %v728
        %v764 = vunpack.c.l.b16 %v729
        %v765 = vunpack.c.l.b16 %v730
        %v766 = vunpack.c.l.b16 %v731
        %v767 = vunpack.c.l.b16 %v732
        %v768 = vunpack.c.l.b16 %v733
        %v769 = vunpack.c.l.b16 %v734
        %v770 = vunpack.c.l.b16 %v735
        %v771 = vunpack.c.l.b16 %v736
        %v772 = vunpack.c.l.b16 %v737
        %v773 = vpack.c.b16 %v758, %v757
        %v774 = vpack.c.b16 %v760, %v759
        %v775 = vpack.c.b16 %v762, %v761
        %v776 = vpack.c.b16 %v764, %v763
        %v777 = vpack.c.b16 %v766, %v765
        %v778 = vpack.c.b16 %v768, %v767
        %v779 = vpack.c.b16 %v770, %v769
        %v780 = vpack.c.b16 %v772, %v771
        %789 = vmatpush.bf16.msra.mxu0 %v451
        %790 = vmatpush.bf16.msra.mxu0 %v450
        %791 = vmatpush.bf16.msra.mxu0 %v449
        %792 = vmatpush.bf16.msra.mxu0 %v448
        %793 = vmatpush.bf16.msra.mxu0 %v447
        %794 = vmatpush.bf16.msra.mxu0 %v446
        %795 = vmatpush.bf16.msra.mxu0 %v445
        %796 = vmatpush.bf16.msra.mxu0 %v444
        %797 = vmatmul.bf16.gmra.mxu0 %v773
        %v798 = vpop.f32.mrf.mxu0
        %v799 = vadd.f32 %v739, %v798
        %v800 = vpop.f32.mrf.mxu0
        %v801 = vadd.f32 %v739, %v800
        %802 = vmatmul.bf16.gmra.mxu0 %v774
        %v803 = vpop.f32.mrf.mxu0
        %v804 = vadd.f32 %v739, %v803
        %v805 = vpop.f32.mrf.mxu0
        %v806 = vadd.f32 %v739, %v805
        %807 = vmatmul.bf16.gmra.mxu0 %v775
        %v808 = vpop.f32.mrf.mxu0
        %v809 = vadd.f32 %v739, %v808
        %v810 = vpop.f32.mrf.mxu0
        %v811 = vadd.f32 %v739, %v810
        %812 = vmatmul.bf16.gmra.mxu0 %v776
        %v813 = vpop.f32.mrf.mxu0
        %v814 = vadd.f32 %v739, %v813
        %v815 = vpop.f32.mrf.mxu0
        %v816 = vadd.f32 %v739, %v815
        %817 = vmatmul.bf16.gmra.mxu0 %v777
        %v818 = vpop.f32.mrf.mxu0
        %v819 = vadd.f32 %v739, %v818
        %v820 = vpop.f32.mrf.mxu0
        %v821 = vadd.f32 %v739, %v820
        %822 = vmatmul.bf16.gmra.mxu0 %v778
        %v823 = vpop.f32.mrf.mxu0
        %v824 = vadd.f32 %v739, %v823
        %v825 = vpop.f32.mrf.mxu0
        %v826 = vadd.f32 %v739, %v825
        %827 = vmatmul.bf16.gmra.mxu0 %v779
        %v828 = vpop.f32.mrf.mxu0
        %v829 = vadd.f32 %v739, %v828
        %v830 = vpop.f32.mrf.mxu0
        %v831 = vadd.f32 %v739, %v830
        %832 = vmatmul.bf16.gmra.mxu0 %v780
        %v833 = vpop.f32.mrf.mxu0
        %v834 = vadd.f32 %v739, %v833
        %v835 = vpop.f32.mrf.mxu0
        %v836 = vadd.f32 %v739, %v835
        %837 = vdwg.mxu0
        %838 = vst [vmem:[%s217] sm:$0xff] %v799
        %839 = vst [vmem:[%s217 + $0x8] sm:$0xff] %v801
        %840 = vst [vmem:[%s217 + $0x10] sm:$0xff] %v804
        %841 = vst [vmem:[%s217 + $0x18] sm:$0xff] %v806
        %842 = vst [vmem:[%s217 + $0x20] sm:$0xff] %v809
        %843 = vst [vmem:[%s217 + $0x28] sm:$0xff] %v811
        %844 = vst [vmem:[%s217 + $0x30] sm:$0xff] %v814
        %845 = vst [vmem:[%s217 + $0x38] sm:$0xff] %v816
        %846 = vst [vmem:[%s217 + $0x40] sm:$0xff] %v819
        %847 = vst [vmem:[%s217 + $0x48] sm:$0xff] %v821
        %848 = vst [vmem:[%s217 + $0x50] sm:$0xff] %v824
        %849 = vst [vmem:[%s217 + $0x58] sm:$0xff] %v826
        %850 = vst [vmem:[%s217 + $0x60] sm:$0xff] %v829
        %851 = vst [vmem:[%s217 + $0x68] sm:$0xff] %v831
        %852 = vst [vmem:[%s217 + $0x70] sm:$0xff] %v834
        %853 = vst [vmem:[%s217 + $0x78] sm:$0xff] %v836
        %s854 = sand.u32 %s137, 1
        %s855 = scalar_lea.sflag [#allocation3], %s854
        %s856 = sand.u32 %s137, 1
        %s857 = smul.addr %s856, 128
        %s858 = scalar_lea.vmem [#allocation2], %s857
        // Predicated region
        $region41: #{tpu_custom_call.1} parent=39 // pred_check
          %p859 = pneg %p147
        $region42: #{tpu_custom_call.1} parent=39 // pred_check_branch
          %861 = sbr.rel (%p859) target = $region44
        $region43: #{tpu_custom_call.1} parent=39 // pred_region
          %863 = vsyncadd %s855, 0
          %s864 = smul.addr %s19, 16
          %s865 = smul.addr %s864, 8
          %s866 = scalar_lea.hbm %s5, %s865
          %s867 = sshll.u32 %s858, 4
          %s868 = int_to_ptr.vmem [resolvable:$true] %s867
          %s869 = sshll.u32 %s866, 4
          %s870 = int_to_ptr.hbm [resolvable:$true] %s869
          %875 = dma.vmem_to_hbm [thread:$0]  %s868, 2048, %s870, %s855, 128, 128, 8
        $region44: #{tpu_custom_call.1} parent=39 // pred_fallthru
          _
      $region40: #{tpu_custom_call.1} parent=5 // pred_fallthru
        _
      %p876 = scmp.le.s32.totalorder 2, %s14
      // Predicated region
      $region45: #{tpu_custom_call.1} parent=5 // pred_check
        %p877 = pneg %p876
      $region46: #{tpu_custom_call.1} parent=5 // pred_check_branch
        %879 = sbr.rel (%p877) target = $region48
      $region47: #{tpu_custom_call.1} parent=5 // pred_region
        %s880 = ssub.s32 %s14, 2
        // Predicated region
        $region49: #{tpu_custom_call.1} parent=47 // pred_check
          %p881 = pneg %p153
        $region50: #{tpu_custom_call.1} parent=47 // pred_check_branch
          %883 = sbr.rel (%p881) target = $region52
        $region51: #{tpu_custom_call.1} parent=47 // pred_region
          %s884 = sand.u32 %s138, 1
          %s885 = scalar_lea.sflag [#allocation3], %s884
          %s886 = sand.u32 %s138, 1
          %s887 = smul.addr %s886, 128
          %s888 = scalar_lea.vmem [#allocation2], %s887
          %890 = dma.done %s885, 2048
        $region52: #{tpu_custom_call.1} parent=47 // pred_fallthru
          _
      $region48: #{tpu_custom_call.1} parent=5 // pred_fallthru
        _
    $region6: #{tpu_custom_call.1} parent=1 // loop_footer
      %s18 = sadd.s32 1, %s14
    $region7: #{tpu_custom_call.1} parent=1 // loop_footer_branch
      %13 = sbr.rel target = $region3
    $region8: #{tpu_custom_call.1} parent=1 // loop_exit
      _
    %891 = vsyncpa [#allocation3], 1
    %s892 = scalar_lea.sflag [#allocation3], 1
    %893 = vsyncpa %s892, 1

// kernel: tpu_custom_call.1
$region0: #{tpu_custom_call.1}
  #allocation0 [shape = 'u32[]', space=smem, size = 0x4, offset = 0x4, fixed_abs, tag = 'smem constant byte address 0x4 - core index']
  #allocation1 [shape = 'u32[72,128]{1,0:T(1,128)}', space=vmem, size = 0x9000, scoped, tag = 'internal scratch']
  %s0 = inlined_call_operand.vmem [shape: bf16[2,128,8], index: 0, kind: input, shape index: {}]
  %s1 = inlined_call_operand.vmem [shape: bf16[8,128], index: 1, kind: input, shape index: {}]
  %s2 = inlined_call_operand.vmem [shape: f32[1,128], index: 2, kind: input, shape index: {}]
  %s3 = inlined_call_operand.vmem [shape: f32[128,128], index: 3, kind: input, shape index: {}]
  %s4 = inlined_call_operand.vmem [shape: f32[1,128], index: 4, kind: input, shape index: {}]
  %s5 = inlined_call_operand.hbm [shape: f32[2,128,128], index: 5, kind: output, shape index: {}]
  %s6 = sld [smem:[#allocation0]]
  $region53: #{tpu_custom_call.1} parent=0
    _
  %s8 = ssub.s32 1, %s6
  %s9 = scalar_select 0, %s8, %s6
  $region1: #{tpu_custom_call.1} parent=0
    #allocation2 [shape = 'u8[131072]{0}', space=vmem, size = 0x20000, scoped, tag = 'output window, operand 0']
    #allocation3 [shape = 's32[2]{0}', space=sflag, size = 0x8, scoped, tag = 'scoped memory for tpu_custom_call.1']
    %10 = vsyncpa [#allocation3], 0
    %s11 = scalar_lea.sflag [#allocation3], 1
    %12 = vsyncpa %s11, 0
    loop: start=0, step=1, limit=4
    $region2: #{tpu_custom_call.1} parent=1 // loop_pre_header
      _
    $region3: #{tpu_custom_call.1} parent=1 // loop_header
      %s14 = sphi 0, %s18
      %p15 = scmp.ge.s32.totalorder %s14, 4
      %s24 = sphi 0, %s26
      %s27 = sphi 0, %s24
      %s28 = sphi 0, %s27
      %s44 = sphi 0, %s28
      %s48 = sphi 0, %s48
      %s50 = sphi 0, %s48
      %s51 = sphi 0, %s50
      %s65 = sphi 0, %s51
      %s69 = sphi 0, %s69
      %s71 = sphi 0, %s69
      %s72 = sphi 0, %s71
      %s86 = sphi 0, %s72
      %s90 = sphi 0, %s90
      %s92 = sphi 0, %s90
      %s93 = sphi 0, %s92
      %s107 = sphi 0, %s93
      %s111 = sphi 0, %s111
      %s113 = sphi 0, %s111
      %s114 = sphi 0, %s113
      %s128 = sphi 0, %s114
      %s134 = sphi 0, %s136
      %s137 = sphi 0, %s134
      %s138 = sphi 0, %s137
      %s154 = sphi 0, %s138
    $region4: #{tpu_custom_call.1} parent=1 // loop_header_branch
      %17 = sbr.rel (%p15) target = $region8
    $region5: #{tpu_custom_call.1} parent=1 // loop_body
      %s19 = ssub.s32 %s14, 1
      %s20 = ssub.s32 %s14, 2
      %s21 = sadd.s32 %s14, 1
      %s22 = ssub.s32 %s14, %s21
      %p23 = scmp.eq.s32.totalorder %s22, 0
      %s25 = sadd.s32 %s24, 1
      %s26 = scalar_select %p23, %s24, %s25
      %p29 = pneg %p23
      %p30 = scmp.eq.s32.totalorder %s14, 1
      %p31 = por %p29, %p30
      %p32 = scmp.ne.s32.totalorder %s24, %s27
      %p33 = scmp.eq.s32.totalorder %s14, 0
      %p34 = por %p32, %p33
      %p35 = scmp.ne.s32.totalorder %s24, %s27
      %p36 = scmp.eq.s32.totalorder %s19, 1
      %p37 = por %p35, %p36
      %p38 = scmp.ne.s32.totalorder %s27, %s28
      %p39 = scmp.eq.s32.totalorder %s19, 0
      %p40 = por %p38, %p39
      %p41 = scmp.ne.s32.totalorder %s27, %s28
      %p42 = scmp.eq.s32.totalorder %s20, 1
      %p43 = por %p41, %p42
      %p45 = scmp.ne.s32.totalorder %s28, %s44
      %p46 = scmp.eq.s32.totalorder %s20, 0
      %p47 = por %p45, %p46
      %s49 = sadd.s32 %s48, 1
      %p52 = scmp.eq.s32.totalorder %s14, 1
      %p53 = scmp.ne.s32.totalorder %s48, %s50
      %p54 = scmp.eq.s32.totalorder %s14, 0
      %p55 = por %p53, %p54
      %p56 = scmp.ne.s32.totalorder %s48, %s50
      %p57 = scmp.eq.s32.totalorder %s19, 1
      %p58 = por %p56, %p57
      %p59 = scmp.ne.s32.totalorder %s50, %s51
      %p60 = scmp.eq.s32.totalorder %s19, 0
      %p61 = por %p59, %p60
      %p62 = scmp.ne.s32.totalorder %s50, %s51
      %p63 = scmp.eq.s32.totalorder %s20, 1
      %p64 = por %p62, %p63
      %p66 = scmp.ne.s32.totalorder %s51, %s65
      %p67 = scmp.eq.s32.totalorder %s20, 0
      %p68 = por %p66, %p67
      %s70 = sadd.s32 %s69, 1
      %p73 = scmp.eq.s32.totalorder %s14, 1
      %p74 = scmp.ne.s32.totalorder %s69, %s71
      %p75 = scmp.eq.s32.totalorder %s14, 0
      %p76 = por %p74, %p75
      %p77 = scmp.ne.s32.totalorder %s69, %s71
      %p78 = scmp.eq.s32.totalorder %s19, 1
      %p79 = por %p77, %p78
      %p80 = scmp.ne.s32.totalorder %s71, %s72
      %p81 = scmp.eq.s32.totalorder %s19, 0
      %p82 = por %p80, %p81
      %p83 = scmp.ne.s32.totalorder %s71, %s72
      %p84 = scmp.eq.s32.totalorder %s20, 1
      %p85 = por %p83, %p84
      %p87 = scmp.ne.s32.totalorder %s72, %s86
      %p88 = scmp.eq.s32.totalorder %s20, 0
      %p89 = por %p87, %p88
      %s91 = sadd.s32 %s90, 1
      %p94 = scmp.eq.s32.totalorder %s14, 1
      %p95 = scmp.ne.s32.totalorder %s90, %s92
      %p96 = scmp.eq.s32.totalorder %s14, 0
      %p97 = por %p95, %p96
      %p98 = scmp.ne.s32.totalorder %s90, %s92
      %p99 = scmp.eq.s32.totalorder %s19, 1
      %p100 = por %p98, %p99
      %p101 = scmp.ne.s32.totalorder %s92, %s93
      %p102 = scmp.eq.s32.totalorder %s19, 0
      %p103 = por %p101, %p102
      %p104 = scmp.ne.s32.totalorder %s92, %s93
      %p105 = scmp.eq.s32.totalorder %s20, 1
      %p106 = por %p104, %p105
      %p108 = scmp.ne.s32.totalorder %s93, %s107
      %p109 = scmp.eq.s32.totalorder %s20, 0
      %p110 = por %p108, %p109
      %s112 = sadd.s32 %s111, 1
      %p115 = scmp.eq.s32.totalorder %s14, 1
      %p116 = scmp.ne.s32.totalorder %s111, %s113
      %p117 = scmp.eq.s32.totalorder %s14, 0
      %p118 = por %p116, %p117
      %p119 = scmp.ne.s32.totalorder %s111, %s113
      %p120 = scmp.eq.s32.totalorder %s19, 1
      %p121 = por %p119, %p120
      %p122 = scmp.ne.s32.totalorder %s113, %s114
      %p123 = scmp.eq.s32.totalorder %s19, 0
      %p124 = por %p122, %p123
      %p125 = scmp.ne.s32.totalorder %s113, %s114
      %p126 = scmp.eq.s32.totalorder %s20, 1
      %p127 = por %p125, %p126
      %p129 = scmp.ne.s32.totalorder %s114, %s128
      %p130 = scmp.eq.s32.totalorder %s20, 0
      %p131 = por %p129, %p130
      %s132 = ssub.s32 %s14, %s21
      %p133 = scmp.eq.s32.totalorder %s132, 0
      %s135 = sadd.s32 %s134, 1
      %s136 = scalar_select %p133, %s134, %s135
      %p139 = pneg %p133
      %p140 = scmp.eq.s32.totalorder %s14, 1
      %p141 = por %p139, %p140
      %p142 = scmp.ne.s32.totalorder %s134, %s137
      %p143 = scmp.eq.s32.totalorder %s14, 0
      %p144 = por %p142, %p143
      %p145 = scmp.ne.s32.totalorder %s134, %s137
      %p146 = scmp.eq.s32.totalorder %s19, 1
      %p147 = por %p145, %p146
      %p148 = scmp.ne.s32.totalorder %s137, %s138
      %p149 = scmp.eq.s32.totalorder %s19, 0
      %p150 = por %p148, %p149
      %p151 = scmp.ne.s32.totalorder %s137, %s138
      %p152 = scmp.eq.s32.totalorder %s20, 1
      %p153 = por %p151, %p152
      %p155 = scmp.ne.s32.totalorder %s138, %s154
      %p156 = scmp.eq.s32.totalorder %s20, 0
      %p157 = por %p155, %p156
      %p158 = scmp.le.s32.totalorder 1, %s14
      %p159 = scmp.lt.s32.totalorder %s14, 3
      %p160 = pnand %p158, %p159
      %p161 = pneg %p160
      // Predicated region
      $region9: #{tpu_custom_call.1} parent=5 // pred_check
        _
      $region10: #{tpu_custom_call.1} parent=5 // pred_check_branch
        %163 = sbr.rel (%p160) target = $region12
      $region11: #{tpu_custom_call.1} parent=5 // pred_region
        %s164 = ssub.s32 %s14, 1
        // Predicated region
        $region13: #{tpu_custom_call.1} parent=11 // pred_check
          %p165 = pneg %p61
        $region14: #{tpu_custom_call.1} parent=11 // pred_check_branch
          %167 = sbr.rel (%p165) target = $region16
        $region15: #{tpu_custom_call.1} parent=11 // pred_region
          _
        $region16: #{tpu_custom_call.1} parent=11 // pred_fallthru
          _
        // Predicated region
        $region17: #{tpu_custom_call.1} parent=11 // pred_check
          %p168 = pneg %p82
        $region18: #{tpu_custom_call.1} parent=11 // pred_check_branch
          %170 = sbr.rel (%p168) target = $region20
        $region19: #{tpu_custom_call.1} parent=11 // pred_region
          _
        $region20: #{tpu_custom_call.1} parent=11 // pred_fallthru
          _
        // Predicated region
        $region21: #{tpu_custom_call.1} parent=11 // pred_check
          %p171 = pneg %p103
        $region22: #{tpu_custom_call.1} parent=11 // pred_check_branch
          %173 = sbr.rel (%p171) target = $region24
        $region23: #{tpu_custom_call.1} parent=11 // pred_region
          _
        $region24: #{tpu_custom_call.1} parent=11 // pred_fallthru
          _
        // Predicated region
        $region25: #{tpu_custom_call.1} parent=11 // pred_check
          %p174 = pneg %p124
        $region26: #{tpu_custom_call.1} parent=11 // pred_check_branch
          %176 = sbr.rel (%p174) target = $region28
        $region27: #{tpu_custom_call.1} parent=11 // pred_region
          _
        $region28: #{tpu_custom_call.1} parent=11 // pred_fallthru
          _
      $region12: #{tpu_custom_call.1} parent=5 // pred_fallthru
        _
      %p177 = scmp.lt.s32.totalorder %s14, 2
      // Predicated region
      $region29: #{tpu_custom_call.1} parent=5 // pred_check
        %p178 = pneg %p177
      $region30: #{tpu_custom_call.1} parent=5 // pred_check_branch
        %180 = sbr.rel (%p178) target = $region32
      $region31: #{tpu_custom_call.1} parent=5 // pred_region
        // Predicated region
        $region33: #{tpu_custom_call.1} parent=31 // pred_check
          %p181 = pneg %p34
        $region34: #{tpu_custom_call.1} parent=31 // pred_check_branch
          %183 = sbr.rel (%p181) target = $region36
        $region35: #{tpu_custom_call.1} parent=31 // pred_region
          %p184 = scmp.lt.s32.totalorder %s14, 1
          %s185 = scalar_select %p184, %s14, 1
          %s186 = smul.addr %s185, 16
          %s187 = smul.addr %s186, 4
          %s188 = scalar_lea.vmem %s0, %s187
        $region36: #{tpu_custom_call.1} parent=31 // pred_fallthru
          _
      $region32: #{tpu_custom_call.1} parent=5 // pred_fallthru
        _
      %p189 = scmp.le.s32.totalorder 1, %s14
      %p190 = scmp.lt.s32.totalorder %s14, 3
      %p191 = pnand %p189, %p190
      %p192 = pneg %p191
      // Predicated region
      $region37: #{tpu_custom_call.1} parent=5 // pred_check
        _
      $region38: #{tpu_custom_call.1} parent=5 // pred_check_branch
        %194 = sbr.rel (%p191) target = $region40
      $region39: #{tpu_custom_call.1} parent=5 // pred_region
        %s195 = ssub.s32 %s14, 1
        %p196 = scmp.lt.s32.totalorder %s19, 1
        %s197 = scalar_select %p196, %s19, 1
        %s198 = smul.addr %s197, 16
        %s199 = smul.addr %s198, 4
        %s200 = scalar_lea.vmem %s0, %s199
        %p201 = pneg %p40
        %p202 = pneg %p37
        %p203 = pneg %p61
        %p204 = pneg %p58
        %p205 = pneg %p82
        %p206 = pneg %p79
        %p207 = pneg %p103
        %p208 = pneg %p100
        %p209 = pneg %p124
        %p210 = pneg %p121
        %p211 = pneg %p150
        %p212 = pneg %p147
        %s213 = sand.u32 %s137, 1
        %s214 = scalar_lea.sflag [#allocation3], %s213
        %s215 = sand.u32 %s137, 1
        %s216 = smul.addr %s215, 128
        %s217 = scalar_lea.vmem [#allocation2], %s216
        %p218 = scmp.lt.s32.totalorder %s19, 1
        %s219 = scalar_select %p218, %s19, 1
        %s220 = smul.addr %s219, 16
        %s221 = smul.addr %s220, 4
        %s222 = scalar_lea.vmem %s0, %s221
        %v224 = vld [vmem:[%s222] sm:$0xf]
        %v225 = vld [vmem:[%s222 + $0x4] sm:$0xf]
        %v226 = vld [vmem:[%s222 + $0x8] sm:$0xf]
        %v227 = vld [vmem:[%s222 + $0xc] sm:$0xf]
        %v228 = vld [vmem:[%s222 + $0x10] sm:$0xf]
        %v229 = vld [vmem:[%s222 + $0x14] sm:$0xf]
        %v230 = vld [vmem:[%s222 + $0x18] sm:$0xf]
        %v231 = vld [vmem:[%s222 + $0x1c] sm:$0xf]
        %v232 = vld [vmem:[%s222 + $0x20] sm:$0xf]
        %v233 = vld [vmem:[%s222 + $0x24] sm:$0xf]
        %v234 = vld [vmem:[%s222 + $0x28] sm:$0xf]
        %v235 = vld [vmem:[%s222 + $0x2c] sm:$0xf]
        %v236 = vld [vmem:[%s222 + $0x30] sm:$0xf]
        %v237 = vld [vmem:[%s222 + $0x34] sm:$0xf]
        %v238 = vld [vmem:[%s222 + $0x38] sm:$0xf]
        %v239 = vld [vmem:[%s222 + $0x3c] sm:$0xf]
        %v240 = vld [vmem:[%s1] sm:$0xf]
        %v241 = vld [vmem:[%s2] sm:$0x1]
        %v242 = vld [vmem:[%s3] sm:$0xff]
        %v243 = vld [vmem:[%s3 + $0x8] sm:$0xff]
        %v244 = vld [vmem:[%s3 + $0x10] sm:$0xff]
        %v245 = vld [vmem:[%s3 + $0x18] sm:$0xff]
        %v246 = vld [vmem:[%s3 + $0x20] sm:$0xff]
        %v247 = vld [vmem:[%s3 + $0x28] sm:$0xff]
        %v248 = vld [vmem:[%s3 + $0x30] sm:$0xff]
        %v249 = vld [vmem:[%s3 + $0x38] sm:$0xff]
        %v250 = vld [vmem:[%s3 + $0x40] sm:$0xff]
        %v251 = vld [vmem:[%s3 + $0x48] sm:$0xff]
        %v252 = vld [vmem:[%s3 + $0x50] sm:$0xff]
        %v253 = vld [vmem:[%s3 + $0x58] sm:$0xff]
        %v254 = vld [vmem:[%s3 + $0x60] sm:$0xff]
        %v255 = vld [vmem:[%s3 + $0x68] sm:$0xff]
        %v256 = vld [vmem:[%s3 + $0x70] sm:$0xff]
        %v257 = vld [vmem:[%s3 + $0x78] sm:$0xff]
        %v258 = vld [vmem:[%s4] sm:$0x1]
        %v275 = vunpack.c.l.b16 %v224
        %v276 = vunpack.c.l.b16 %v225
        %v277 = vunpack.c.l.b16 %v226
        %v278 = vunpack.c.l.b16 %v227
        %v279 = vunpack.c.l.b16 %v228
        %v280 = vunpack.c.l.b16 %v229
        %v281 = vunpack.c.l.b16 %v230
        %v282 = vunpack.c.l.b16 %v231
        %v283 = vunpack.c.l.b16 %v232
        %v284 = vunpack.c.l.b16 %v233
        %v285 = vunpack.c.l.b16 %v234
        %v286 = vunpack.c.l.b16 %v235
        %v287 = vunpack.c.l.b16 %v236
        %v288 = vunpack.c.l.b16 %v237
        %v289 = vunpack.c.l.b16 %v238
        %v290 = vunpack.c.l.b16 %v239
        %v291 = vpack.c.b16 %v276, %v275
        %v292 = vpack.c.b16 %v278, %v277
        %v293 = vpack.c.b16 %v280, %v279
        %v294 = vpack.c.b16 %v282, %v281
        %v295 = vpack.c.b16 %v284, %v283
        %v296 = vpack.c.b16 %v286, %v285
        %v297 = vpack.c.b16 %v288, %v287
        %v298 = vpack.c.b16 %v290, %v289
        %vm299 = vcmask 64512
        %v301 = vsel %vm299, %v291, 0
        %v304 = vsel %vm299, %v292, 0
        %v307 = vsel %vm299, %v293, 0
        %v310 = vsel %vm299, %v294, 0
        %v313 = vsel %vm299, %v295, 0
        %v316 = vsel %vm299, %v296, 0
        %v319 = vsel %vm299, %v297, 0
        %v322 = vsel %vm299, %v298, 0
        %vm324 = vcmask 1043456
        %v326 = vsel %vm324, %v240, 0
        %328 = vmatpush.bf16.msra.mxu0 0
        %329 = vmatpush.bf16.msra.mxu0 0
        %330 = vmatpush.bf16.msra.mxu0 0
        %331 = vmatpush.bf16.msra.mxu0 0
        %332 = vmatpush.bf16.msra.mxu0 0
        %333 = vmatpush.bf16.msra.mxu0 0
        %334 = vmatpush.bf16.msra.mxu0 0
        %335 = vmatpush.bf16.msra.mxu0 %v326
        %336 = vmatmul.bf16.gmra.mxu0 %v301
        %v337 = vpop.f32.mrf.mxu0
        %v338 = vadd.f32 0.0, %v337
        %v339 = vpop.f32.mrf.mxu0
        %v340 = vadd.f32 0.0, %v339
        %341 = vmatmul.bf16.gmra.mxu0 %v304
        %v342 = vpop.f32.mrf.mxu0
        %v343 = vadd.f32 0.0, %v342
        %v344 = vpop.f32.mrf.mxu0
        %v345 = vadd.f32 0.0, %v344
        %346 = vmatmul.bf16.gmra.mxu0 %v307
        %v347 = vpop.f32.mrf.mxu0
        %v348 = vadd.f32 0.0, %v347
        %v349 = vpop.f32.mrf.mxu0
        %v350 = vadd.f32 0.0, %v349
        %351 = vmatmul.bf16.gmra.mxu0 %v310
        %v352 = vpop.f32.mrf.mxu0
        %v353 = vadd.f32 0.0, %v352
        %v354 = vpop.f32.mrf.mxu0
        %v355 = vadd.f32 0.0, %v354
        %356 = vmatmul.bf16.gmra.mxu0 %v313
        %v357 = vpop.f32.mrf.mxu0
        %v358 = vadd.f32 0.0, %v357
        %v359 = vpop.f32.mrf.mxu0
        %v360 = vadd.f32 0.0, %v359
        %361 = vmatmul.bf16.gmra.mxu0 %v316
        %v362 = vpop.f32.mrf.mxu0
        %v363 = vadd.f32 0.0, %v362
        %v364 = vpop.f32.mrf.mxu0
        %v365 = vadd.f32 0.0, %v364
        %366 = vmatmul.bf16.gmra.mxu0 %v319
        %v367 = vpop.f32.mrf.mxu0
        %v368 = vadd.f32 0.0, %v367
        %v369 = vpop.f32.mrf.mxu0
        %v370 = vadd.f32 0.0, %v369
        %371 = vmatmul.bf16.gmra.mxu0 %v322
        %v372 = vpop.f32.mrf.mxu0
        %v373 = vadd.f32 0.0, %v372
        %v374 = vpop.f32.mrf.mxu0
        %v375 = vadd.f32 0.0, %v374
        %376 = vdwg.mxu0
        %v378 = vperm.slane %v241, 0
        %v380 = vadd.f32 %v338, %v378
        %v381 = vadd.f32 %v340, %v378
        %v382 = vadd.f32 %v343, %v378
        %v383 = vadd.f32 %v345, %v378
        %v384 = vadd.f32 %v348, %v378
        %v385 = vadd.f32 %v350, %v378
        %v386 = vadd.f32 %v353, %v378
        %v387 = vadd.f32 %v355, %v378
        %v388 = vadd.f32 %v358, %v378
        %v389 = vadd.f32 %v360, %v378
        %v390 = vadd.f32 %v363, %v378
        %v391 = vadd.f32 %v365, %v378
        %v392 = vadd.f32 %v368, %v378
        %v393 = vadd.f32 %v370, %v378
        %v394 = vadd.f32 %v373, %v378
        %v395 = vadd.f32 %v375, %v378
        %v396 = vpack.c.bf16 %v380, %v380
        %v397 = vpack.c.bf16 %v381, %v381
        %v398 = vpack.c.bf16 %v382, %v382
        %v399 = vpack.c.bf16 %v383, %v383
        %v400 = vpack.c.bf16 %v384, %v384
        %v401 = vpack.c.bf16 %v385, %v385
        %v402 = vpack.c.bf16 %v386, %v386
        %v403 = vpack.c.bf16 %v387, %v387
        %v404 = vpack.c.bf16 %v388, %v388
        %v405 = vpack.c.bf16 %v389, %v389
        %v406 = vpack.c.bf16 %v390, %v390
        %v407 = vpack.c.bf16 %v391, %v391
        %v408 = vpack.c.bf16 %v392, %v392
        %v409 = vpack.c.bf16 %v393, %v393
        %v410 = vpack.c.bf16 %v394, %v394
        %v411 = vpack.c.bf16 %v395, %v395
        %v428 = vunpack.c.l.b16 %v396
        %v429 = vunpack.c.l.b16 %v397
        %v430 = vunpack.c.l.b16 %v398
        %v431 = vunpack.c.l.b16 %v399
        %v432 = vunpack.c.l.b16 %v400
        %v433 = vunpack.c.l.b16 %v401
        %v434 = vunpack.c.l.b16 %v402
        %v435 = vunpack.c.l.b16 %v403
        %v436 = vunpack.c.l.b16 %v404
        %v437 = vunpack.c.l.b16 %v405
        %v438 = vunpack.c.l.b16 %v406
        %v439 = vunpack.c.l.b16 %v407
        %v440 = vunpack.c.l.b16 %v408
        %v441 = vunpack.c.l.b16 %v409
        %v442 = vunpack.c.l.b16 %v410
        %v443 = vunpack.c.l.b16 %v411
        %v444 = vpack.c.b16 %v429, %v428
        %v445 = vpack.c.b16 %v431, %v430
        %v446 = vpack.c.b16 %v433, %v432
        %v447 = vpack.c.b16 %v435, %v434
        %v448 = vpack.c.b16 %v437, %v436
        %v449 = vpack.c.b16 %v439, %v438
        %v450 = vpack.c.b16 %v441, %v440
        %v451 = vpack.c.b16 %v443, %v442
        %460 = vmatpush.bf16.xpose.msra.mxu0 %v451
        %461 = vmatpush.bf16.xpose.msra.mxu0 %v450
        %462 = vmatpush.bf16.xpose.msra.mxu0 %v449
        %463 = vmatpush.bf16.xpose.msra.mxu0 %v448
        %464 = vmatpush.bf16.xpose.msra.mxu0 %v447
        %465 = vmatpush.bf16.xpose.msra.mxu0 %v446
        %466 = vmatpush.bf16.xpose.msra.mxu0 %v445
        %467 = vmatpush.bf16.xpose.msra.mxu0 %v444
        %468 = vmatmul.bf16.gmra.mxu0 %v444
        %v469 = vpop.f32.mrf.mxu0
        %v470 = vadd.f32 0.0, %v469
        %v471 = vpop.f32.mrf.mxu0
        %v472 = vadd.f32 0.0, %v471
        %473 = vmatmul.bf16.gmra.mxu0 %v445
        %v474 = vpop.f32.mrf.mxu0
        %v475 = vadd.f32 0.0, %v474
        %v476 = vpop.f32.mrf.mxu0
        %v477 = vadd.f32 0.0, %v476
        %478 = vmatmul.bf16.gmra.mxu0 %v446
        %v479 = vpop.f32.mrf.mxu0
        %v480 = vadd.f32 0.0, %v479
        %v481 = vpop.f32.mrf.mxu0
        %v482 = vadd.f32 0.0, %v481
        %483 = vmatmul.bf16.gmra.mxu0 %v447
        %v484 = vpop.f32.mrf.mxu0
        %v485 = vadd.f32 0.0, %v484
        %v486 = vpop.f32.mrf.mxu0
        %v487 = vadd.f32 0.0, %v486
        %488 = vmatmul.bf16.gmra.mxu0 %v448
        %v489 = vpop.f32.mrf.mxu0
        %v490 = vadd.f32 0.0, %v489
        %v491 = vpop.f32.mrf.mxu0
        %v492 = vadd.f32 0.0, %v491
        %493 = vmatmul.bf16.gmra.mxu0 %v449
        %v494 = vpop.f32.mrf.mxu0
        %v495 = vadd.f32 0.0, %v494
        %v496 = vpop.f32.mrf.mxu0
        %v497 = vadd.f32 0.0, %v496
        %498 = vmatmul.bf16.gmra.mxu0 %v450
        %v499 = vpop.f32.mrf.mxu0
        %v500 = vadd.f32 0.0, %v499
        %v501 = vpop.f32.mrf.mxu0
        %v502 = vadd.f32 0.0, %v501
        %503 = vmatmul.bf16.gmra.mxu0 %v451
        %v504 = vpop.f32.mrf.mxu0
        %v505 = vadd.f32 0.0, %v504
        %v506 = vpop.f32.mrf.mxu0
        %v507 = vadd.f32 0.0, %v506
        %508 = vdwg.mxu0
        %vm509 = vcmp.ne.f32.partialorder %v242, 0.0
        %vm510 = vcmp.ne.f32.partialorder %v243, 0.0
        %vm511 = vcmp.ne.f32.partialorder %v244, 0.0
        %vm512 = vcmp.ne.f32.partialorder %v245, 0.0
        %vm513 = vcmp.ne.f32.partialorder %v246, 0.0
        %vm514 = vcmp.ne.f32.partialorder %v247, 0.0
        %vm515 = vcmp.ne.f32.partialorder %v248, 0.0
        %vm516 = vcmp.ne.f32.partialorder %v249, 0.0
        %vm517 = vcmp.ne.f32.partialorder %v250, 0.0
        %vm518 = vcmp.ne.f32.partialorder %v251, 0.0
        %vm519 = vcmp.ne.f32.partialorder %v252, 0.0
        %vm520 = vcmp.ne.f32.partialorder %v253, 0.0
        %vm521 = vcmp.ne.f32.partialorder %v254, 0.0
        %vm522 = vcmp.ne.f32.partialorder %v255, 0.0
        %vm523 = vcmp.ne.f32.partialorder %v256, 0.0
        %vm524 = vcmp.ne.f32.partialorder %v257, 0.0
        %v525 = vmul.f32 %v470, %v242
        %v526 = vmul.f32 %v472, %v243
        %v527 = vmul.f32 %v475, %v244
        %v528 = vmul.f32 %v477, %v245
        %v529 = vmul.f32 %v480, %v246
        %v530 = vmul.f32 %v482, %v247
        %v531 = vmul.f32 %v485, %v248
        %v532 = vmul.f32 %v487, %v249
        %v533 = vmul.f32 %v490, %v250
        %v534 = vmul.f32 %v492, %v251
        %v535 = vmul.f32 %v495, %v252
        %v536 = vmul.f32 %v497, %v253
        %v537 = vmul.f32 %v500, %v254
        %v538 = vmul.f32 %v502, %v255
        %v539 = vmul.f32 %v505, %v256
        %v540 = vmul.f32 %v507, %v257
        %v541 = vsel %vm509, %v525, -1e+16
        %v542 = vsel %vm510, %v526, -1e+16
        %v543 = vsel %vm511, %v527, -1e+16
        %v544 = vsel %vm512, %v528, -1e+16
        %v545 = vsel %vm513, %v529, -1e+16
        %v546 = vsel %vm514, %v530, -1e+16
        %v547 = vsel %vm515, %v531, -1e+16
        %v548 = vsel %vm516, %v532, -1e+16
        %v549 = vsel %vm517, %v533, -1e+16
        %v550 = vsel %vm518, %v534, -1e+16
        %v551 = vsel %vm519, %v535, -1e+16
        %v552 = vsel %vm520, %v536, -1e+16
        %v553 = vsel %vm521, %v537, -1e+16
        %v554 = vsel %vm522, %v538, -1e+16
        %v555 = vsel %vm523, %v539, -1e+16
        %v556 = vsel %vm524, %v540, -1e+16
        %557 = vmax.xlane.f32.xlu0 %v541
        %v558 = vpop.xlane.xlu0 %557
        %559 = vmax.xlane.f32.xlu0 %v542
        %v560 = vpop.xlane.xlu0 %559
        %561 = vmax.xlane.f32.xlu0 %v543
        %v562 = vpop.xlane.xlu0 %561
        %563 = vmax.xlane.f32.xlu0 %v544
        %v564 = vpop.xlane.xlu0 %563
        %565 = vmax.xlane.f32.xlu0 %v545
        %v566 = vpop.xlane.xlu0 %565
        %567 = vmax.xlane.f32.xlu0 %v546
        %v568 = vpop.xlane.xlu0 %567
        %569 = vmax.xlane.f32.xlu0 %v547
        %v570 = vpop.xlane.xlu0 %569
        %571 = vmax.xlane.f32.xlu0 %v548
        %v572 = vpop.xlane.xlu0 %571
        %573 = vmax.xlane.f32.xlu0 %v549
        %v574 = vpop.xlane.xlu0 %573
        %575 = vmax.xlane.f32.xlu0 %v550
        %v576 = vpop.xlane.xlu0 %575
        %577 = vmax.xlane.f32.xlu0 %v551
        %v578 = vpop.xlane.xlu0 %577
        %579 = vmax.xlane.f32.xlu0 %v552
        %v580 = vpop.xlane.xlu0 %579
        %581 = vmax.xlane.f32.xlu0 %v553
        %v582 = vpop.xlane.xlu0 %581
        %583 = vmax.xlane.f32.xlu0 %v554
        %v584 = vpop.xlane.xlu0 %583
        %585 = vmax.xlane.f32.xlu0 %v555
        %v586 = vpop.xlane.xlu0 %585
        %587 = vmax.xlane.f32.xlu0 %v556
        %v588 = vpop.xlane.xlu0 %587
        %v589 = vsub.f32 %v541, %v558
        %v590 = vsub.f32 %v542, %v560
        %v591 = vsub.f32 %v543, %v562
        %v592 = vsub.f32 %v544, %v564
        %v593 = vsub.f32 %v545, %v566
        %v594 = vsub.f32 %v546, %v568
        %v595 = vsub.f32 %v547, %v570
        %v596 = vsub.f32 %v548, %v572
        %v597 = vsub.f32 %v549, %v574
        %v598 = vsub.f32 %v550, %v576
        %v599 = vsub.f32 %v551, %v578
        %v600 = vsub.f32 %v552, %v580
        %v601 = vsub.f32 %v553, %v582
        %v602 = vsub.f32 %v554, %v584
        %v603 = vsub.f32 %v555, %v586
        %v604 = vsub.f32 %v556, %v588
        %v605 = vmul.f32 %v589, 1.442695
        %v606 = vpow.pop %v605
        %v607 = vmul.f32 %v590, 1.442695
        %v608 = vpow.pop %v607
        %v609 = vmul.f32 %v591, 1.442695
        %v610 = vpow.pop %v609
        %v611 = vmul.f32 %v592, 1.442695
        %v612 = vpow.pop %v611
        %v613 = vmul.f32 %v593, 1.442695
        %v614 = vpow.pop %v613
        %v615 = vmul.f32 %v594, 1.442695
        %v616 = vpow.pop %v615
        %v617 = vmul.f32 %v595, 1.442695
        %v618 = vpow.pop %v617
        %v619 = vmul.f32 %v596, 1.442695
        %v620 = vpow.pop %v619
        %v621 = vmul.f32 %v597, 1.442695
        %v622 = vpow.pop %v621
        %v623 = vmul.f32 %v598, 1.442695
        %v624 = vpow.pop %v623
        %v625 = vmul.f32 %v599, 1.442695
        %v626 = vpow.pop %v625
        %v627 = vmul.f32 %v600, 1.442695
        %v628 = vpow.pop %v627
        %v629 = vmul.f32 %v601, 1.442695
        %v630 = vpow.pop %v629
        %v631 = vmul.f32 %v602, 1.442695
        %v632 = vpow.pop %v631
        %v633 = vmul.f32 %v603, 1.442695
        %v634 = vpow.pop %v633
        %v635 = vmul.f32 %v604, 1.442695
        %v636 = vpow.pop %v635
        %v637 = vlaneseq
        %v638 = vand.u32 %v637, 127
        %vm639 = vcmp.lt.s32.totalorder %v638, 16
        %v640 = vsel %vm639, 1, 0
        %vm641 = vcmp.eq.s32.totalorder %v640, 1
        %v642 = vsel %vm641, %v606, 0.0
        %v643 = vsel %vm641, %v608, 0.0
        %v644 = vsel %vm641, %v610, 0.0
        %v645 = vsel %vm641, %v612, 0.0
        %v646 = vsel %vm641, %v614, 0.0
        %v647 = vsel %vm641, %v616, 0.0
        %v648 = vsel %vm641, %v618, 0.0
        %v649 = vsel %vm641, %v620, 0.0
        %v650 = vsel %vm641, %v622, 0.0
        %v651 = vsel %vm641, %v624, 0.0
        %v652 = vsel %vm641, %v626, 0.0
        %v653 = vsel %vm641, %v628, 0.0
        %v654 = vsel %vm641, %v630, 0.0
        %v655 = vsel %vm641, %v632, 0.0
        %v656 = vsel %vm641, %v634, 0.0
        %v657 = vsel %vm641, %v636, 0.0
        %658 = vadd.xlane.f32.xlu0 %v642
        %v659 = vpop.xlane.xlu0 %658
        %660 = vadd.xlane.f32.xlu0 %v643
        %v661 = vpop.xlane.xlu0 %660
        %662 = vadd.xlane.f32.xlu0 %v644
        %v663 = vpop.xlane.xlu0 %662
        %664 = vadd.xlane.f32.xlu0 %v645
        %v665 = vpop.xlane.xlu0 %664
        %666 = vadd.xlane.f32.xlu0 %v646
        %v667 = vpop.xlane.xlu0 %666
        %668 = vadd.xlane.f32.xlu0 %v647
        %v669 = vpop.xlane.xlu0 %668
        %670 = vadd.xlane.f32.xlu0 %v648
        %v671 = vpop.xlane.xlu0 %670
        %672 = vadd.xlane.f32.xlu0 %v649
        %v673 = vpop.xlane.xlu0 %672
        %674 = vadd.xlane.f32.xlu0 %v650
        %v675 = vpop.xlane.xlu0 %674
        %676 = vadd.xlane.f32.xlu0 %v651
        %v677 = vpop.xlane.xlu0 %676
        %678 = vadd.xlane.f32.xlu0 %v652
        %v679 = vpop.xlane.xlu0 %678
        %680 = vadd.xlane.f32.xlu0 %v653
        %v681 = vpop.xlane.xlu0 %680
        %682 = vadd.xlane.f32.xlu0 %v654
        %v683 = vpop.xlane.xlu0 %682
        %684 = vadd.xlane.f32.xlu0 %v655
        %v685 = vpop.xlane.xlu0 %684
        %686 = vadd.xlane.f32.xlu0 %v656
        %v687 = vpop.xlane.xlu0 %686
        %688 = vadd.xlane.f32.xlu0 %v657
        %v689 = vpop.xlane.xlu0 %688
        %v690 = vrcp.pop %v659
        %v691 = vrcp.pop %v661
        %v692 = vrcp.pop %v663
        %v693 = vrcp.pop %v665
        %v694 = vrcp.pop %v667
        %v695 = vrcp.pop %v669
        %v696 = vrcp.pop %v671
        %v697 = vrcp.pop %v673
        %v698 = vrcp.pop %v675
        %v699 = vrcp.pop %v677
        %v700 = vrcp.pop %v679
        %v701 = vrcp.pop %v681
        %v702 = vrcp.pop %v683
        %v703 = vrcp.pop %v685
        %v704 = vrcp.pop %v687
        %v705 = vrcp.pop %v689
        %v706 = vmul.f32 %v642, %v690
        %v707 = vmul.f32 %v643, %v691
        %v708 = vmul.f32 %v644, %v692
        %v709 = vmul.f32 %v645, %v693
        %v710 = vmul.f32 %v646, %v694
        %v711 = vmul.f32 %v647, %v695
        %v712 = vmul.f32 %v648, %v696
        %v713 = vmul.f32 %v649, %v697
        %v714 = vmul.f32 %v650, %v698
        %v715 = vmul.f32 %v651, %v699
        %v716 = vmul.f32 %v652, %v700
        %v717 = vmul.f32 %v653, %v701
        %v718 = vmul.f32 %v654, %v702
        %v719 = vmul.f32 %v655, %v703
        %v720 = vmul.f32 %v656, %v704
        %v721 = vmul.f32 %v657, %v705
        %v722 = vpack.c.bf16 %v706, %v706
        %v723 = vpack.c.bf16 %v707, %v707
        %v724 = vpack.c.bf16 %v708, %v708
        %v725 = vpack.c.bf16 %v709, %v709
        %v726 = vpack.c.bf16 %v710, %v710
        %v727 = vpack.c.bf16 %v711, %v711
        %v728 = vpack.c.bf16 %v712, %v712
        %v729 = vpack.c.bf16 %v713, %v713
        %v730 = vpack.c.bf16 %v714, %v714
        %v731 = vpack.c.bf16 %v715, %v715
        %v732 = vpack.c.bf16 %v716, %v716
        %v733 = vpack.c.bf16 %v717, %v717
        %v734 = vpack.c.bf16 %v718, %v718
        %v735 = vpack.c.bf16 %v719, %v719
        %v736 = vpack.c.bf16 %v720, %v720
        %v737 = vpack.c.bf16 %v721, %v721
        %v739 = vperm.slane %v258, 0
        %v757 = vunpack.c.l.b16 %v722
        %v758 = vunpack.c.l.b16 %v723
        %v759 = vunpack.c.l.b16 %v724
        %v760 = vunpack.c.l.b16 %v725
        %v761 = vunpack.c.l.b16 %v726
        %v762 = vunpack.c.l.b16 %v727
        %v763 = vunpack.c.l.b16 %v728
        %v764 = vunpack.c.l.b16 %v729
        %v765 = vunpack.c.l.b16 %v730
        %v766 = vunpack.c.l.b16 %v731
        %v767 = vunpack.c.l.b16 %v732
        %v768 = vunpack.c.l.b16 %v733
        %v769 = vunpack.c.l.b16 %v734
        %v770 = vunpack.c.l.b16 %v735
        %v771 = vunpack.c.l.b16 %v736
        %v772 = vunpack.c.l.b16 %v737
        %v773 = vpack.c.b16 %v758, %v757
        %v774 = vpack.c.b16 %v760, %v759
        %v775 = vpack.c.b16 %v762, %v761
        %v776 = vpack.c.b16 %v764, %v763
        %v777 = vpack.c.b16 %v766, %v765
        %v778 = vpack.c.b16 %v768, %v767
        %v779 = vpack.c.b16 %v770, %v769
        %v780 = vpack.c.b16 %v772, %v771
        %789 = vmatpush.bf16.msra.mxu0 %v451
        %790 = vmatpush.bf16.msra.mxu0 %v450
        %791 = vmatpush.bf16.msra.mxu0 %v449
        %792 = vmatpush.bf16.msra.mxu0 %v448
        %793 = vmatpush.bf16.msra.mxu0 %v447
        %794 = vmatpush.bf16.msra.mxu0 %v446
        %795 = vmatpush.bf16.msra.mxu0 %v445
        %796 = vmatpush.bf16.msra.mxu0 %v444
        %797 = vmatmul.bf16.gmra.mxu0 %v773
        %v798 = vpop.f32.mrf.mxu0
        %v799 = vadd.f32 %v739, %v798
        %v800 = vpop.f32.mrf.mxu0
        %v801 = vadd.f32 %v739, %v800
        %802 = vmatmul.bf16.gmra.mxu0 %v774
        %v803 = vpop.f32.mrf.mxu0
        %v804 = vadd.f32 %v739, %v803
        %v805 = vpop.f32.mrf.mxu0
        %v806 = vadd.f32 %v739, %v805
        %807 = vmatmul.bf16.gmra.mxu0 %v775
        %v808 = vpop.f32.mrf.mxu0
        %v809 = vadd.f32 %v739, %v808
        %v810 = vpop.f32.mrf.mxu0
        %v811 = vadd.f32 %v739, %v810
        %812 = vmatmul.bf16.gmra.mxu0 %v776
        %v813 = vpop.f32.mrf.mxu0
        %v814 = vadd.f32 %v739, %v813
        %v815 = vpop.f32.mrf.mxu0
        %v816 = vadd.f32 %v739, %v815
        %817 = vmatmul.bf16.gmra.mxu0 %v777
        %v818 = vpop.f32.mrf.mxu0
        %v819 = vadd.f32 %v739, %v818
        %v820 = vpop.f32.mrf.mxu0
        %v821 = vadd.f32 %v739, %v820
        %822 = vmatmul.bf16.gmra.mxu0 %v778
        %v823 = vpop.f32.mrf.mxu0
        %v824 = vadd.f32 %v739, %v823
        %v825 = vpop.f32.mrf.mxu0
        %v826 = vadd.f32 %v739, %v825
        %827 = vmatmul.bf16.gmra.mxu0 %v779
        %v828 = vpop.f32.mrf.mxu0
        %v829 = vadd.f32 %v739, %v828
        %v830 = vpop.f32.mrf.mxu0
        %v831 = vadd.f32 %v739, %v830
        %832 = vmatmul.bf16.gmra.mxu0 %v780
        %v833 = vpop.f32.mrf.mxu0
        %v834 = vadd.f32 %v739, %v833
        %v835 = vpop.f32.mrf.mxu0
        %v836 = vadd.f32 %v739, %v835
        %837 = vdwg.mxu0
        %838 = vst [vmem:[%s217] sm:$0xff] %v799
        %839 = vst [vmem:[%s217 + $0x8] sm:$0xff] %v801
        %840 = vst [vmem:[%s217 + $0x10] sm:$0xff] %v804
        %841 = vst [vmem:[%s217 + $0x18] sm:$0xff] %v806
        %842 = vst [vmem:[%s217 + $0x20] sm:$0xff] %v809
        %843 = vst [vmem:[%s217 + $0x28] sm:$0xff] %v811
        %844 = vst [vmem:[%s217 + $0x30] sm:$0xff] %v814
        %845 = vst [vmem:[%s217 + $0x38] sm:$0xff] %v816
        %846 = vst [vmem:[%s217 + $0x40] sm:$0xff] %v819
        %847 = vst [vmem:[%s217 + $0x48] sm:$0xff] %v821
        %848 = vst [vmem:[%s217 + $0x50] sm:$0xff] %v824
        %849 = vst [vmem:[%s217 + $0x58] sm:$0xff] %v826
        %850 = vst [vmem:[%s217 + $0x60] sm:$0xff] %v829
        %851 = vst [vmem:[%s217 + $0x68] sm:$0xff] %v831
        %852 = vst [vmem:[%s217 + $0x70] sm:$0xff] %v834
        %853 = vst [vmem:[%s217 + $0x78] sm:$0xff] %v836
        %s854 = sand.u32 %s137, 1
        %s855 = scalar_lea.sflag [#allocation3], %s854
        %s856 = sand.u32 %s137, 1
        %s857 = smul.addr %s856, 128
        %s858 = scalar_lea.vmem [#allocation2], %s857
        // Predicated region
        $region41: #{tpu_custom_call.1} parent=39 // pred_check
          %p859 = pneg %p147
        $region42: #{tpu_custom_call.1} parent=39 // pred_check_branch
          %861 = sbr.rel (%p859) target = $region44
        $region43: #{tpu_custom_call.1} parent=39 // pred_region
          %863 = vsyncadd %s855, 0
          %s864 = smul.addr %s19, 16
          %s865 = smul.addr %s864, 8
          %s866 = scalar_lea.hbm %s5, %s865
          %s867 = sshll.u32 %s858, 4
          %s868 = int_to_ptr.vmem [resolvable:$true] %s867
          %s869 = sshll.u32 %s866, 4
          %s870 = int_to_ptr.hbm [resolvable:$true] %s869
          %875 = dma.vmem_to_hbm [thread:$0]  %s868, 2048, %s870, %s855, 128, 128, 8
        $region44: #{tpu_custom_call.1} parent=39 // pred_fallthru
          _
      $region40: #{tpu_custom_call.1} parent=5 // pred_fallthru
        _
      %p876 = scmp.le.s32.totalorder 2, %s14
      // Predicated region
      $region45: #{tpu_custom_call.1} parent=5 // pred_check
        %p877 = pneg %p876
      $region46: #{tpu_custom_call.1} parent=5 // pred_check_branch
        %879 = sbr.rel (%p877) target = $region48
      $region47: #{tpu_custom_call.1} parent=5 // pred_region
        %s880 = ssub.s32 %s14, 2
        // Predicated region
        $region49: #{tpu_custom_call.1} parent=47 // pred_check
          %p881 = pneg %p153
        $region50: #{tpu_custom_call.1} parent=47 // pred_check_branch
          %883 = sbr.rel (%p881) target = $region52
        $region51: #{tpu_custom_call.1} parent=47 // pred_region
          %s884 = sand.u32 %s138, 1
          %s885 = scalar_lea.sflag [#allocation3], %s884
          %s886 = sand.u32 %s138, 1
          %s887 = smul.addr %s886, 128
          %s888 = scalar_lea.vmem [#allocation2], %s887
          %890 = dma.done %s885, 2048
        $region52: #{tpu_custom_call.1} parent=47 // pred_fallthru
          _
      $region48: #{tpu_custom_call.1} parent=5 // pred_fallthru
        _
    $region6: #{tpu_custom_call.1} parent=1 // loop_footer
      %s18 = sadd.s32 1, %s14
    $region7: #{tpu_custom_call.1} parent=1 // loop_footer_branch
      %13 = sbr.rel target = $region3
    $region8: #{tpu_custom_call.1} parent=1 // loop_exit
      _
    %891 = vsyncpa [#allocation3], 1
    %s892 = scalar_lea.sflag [#allocation3], 1
    %893 = vsyncpa %s892, 1

</llo_original>
